<compile_context>
chip_gen: v7x
topology: tpu7x:2x2x1
jax: 0.10.0
libtpu: 0.0.40
codegen_flags: <defaults>
</compile_context>

<pallas_src>
import functools

import jax
import jax.numpy as jnp
import numpy as np
from jax.experimental import pallas as pl
from jax.experimental.pallas import tpu as pltpu


# ---------------------------------------------------------------------------
# Kernel body.  Operates on a channel-major (C, L) activation slab with the
# flattened spatial axis L (multiple of 128) on the lanes.  BN scales (and the
# 0.5 residual factor) are already folded into the weights by the wrapper.
# ---------------------------------------------------------------------------
def _inv_res_kernel(x_ref, w_ex_ref, ex_b_ref,
                    w_dw_ref, dw_b_ref,
                    w_pw_ref, pw_b_ref,
                    mask_ref, o_ref, *, W):
    # Block shapes:
    #   x_ref : (Cin, L) bf16           o_ref : (Cout, L) bf16
    #   w_ex  : (Chid, Cin) bf16        ex_b  : (Chid, 1) f32
    #   w_dw  : (Chid, 9)  f32  (k = ki*3 + kj, BN scale folded)
    #   dw_b  : (Chid, 1) f32
    #   w_pw  : (Cout, Chid) bf16 (0.5 * BN scale folded)   pw_b : (Cout, 1) f32
    #   mask  : (4, L) f32 rows = [not_top, not_bot, not_left, not_right]
    x = x_ref[...]                                          # (Cin, L) bf16

    # ---- expand 1x1 conv (MXU, bf16 operands, f32 accumulate) + bias + ReLU ----
    h = jnp.dot(w_ex_ref[...], x, preferred_element_type=jnp.float32)
    h = jnp.maximum(h + ex_b_ref[...], 0.0)                 # (Chid, L) f32

    # ---- depthwise 3x3 (stride 1, pad 1): separable column-then-row pass ----
    m = mask_ref[...]                                       # (4, L) f32 0/1
    not_top, not_bot = m[0:1, :], m[1:2, :]
    not_left, not_right = m[2:3, :], m[3:4, :]
    w_dw = w_dw_ref[...]                                    # (Chid, 9), loaded once

    L = h.shape[1]
    # roll(v, s)[p] = v[p - s]; all shifts kept non-negative.
    h_left = pltpu.roll(h, 1, 1) * not_left                 # source (i, j-1)
    h_right = pltpu.roll(h, L - 1, 1) * not_right           # source (i, j+1)

    # Per-row-offset column-combined sums (no row shift yet).
    c0 = h_left * w_dw[:, 0:1] + h * w_dw[:, 1:2] + h_right * w_dw[:, 2:3]
    c1 = h_left * w_dw[:, 3:4] + h * w_dw[:, 4:5] + h_right * w_dw[:, 5:6]
    c2 = h_left * w_dw[:, 6:7] + h * w_dw[:, 7:8] + h_right * w_dw[:, 8:9]

    # Row pass: bring c0 from row i-1 and c2 from row i+1; wraps are masked.
    acc = (pltpu.roll(c0, W, 1) * not_top
           + c1
           + pltpu.roll(c2, L - W, 1) * not_bot)
    d = jnp.maximum(acc + dw_b_ref[...], 0.0)               # (Chid, L) f32

    # ---- project 1x1 conv (MXU) + bias + residual (all 0.5 factors folded) ----
    p = jnp.dot(w_pw_ref[...], d.astype(jnp.bfloat16),
                preferred_element_type=jnp.float32)         # (Cout, L) f32
    p = p + pw_b_ref[...] + 0.5 * x.astype(jnp.float32)
    o_ref[...] = p.astype(o_ref.dtype)


# ---------------------------------------------------------------------------
# Edge masks (host numpy -> constant-folded under jit).
# ---------------------------------------------------------------------------
def _edge_masks(H, W, n_tile):
    r = np.repeat(np.arange(H), W)
    c = np.tile(np.arange(W), H)
    m = np.stack([r >= 1, r <= H - 2, c >= 1, c <= W - 2]).astype(np.float32)
    return jnp.asarray(np.tile(m, (1, n_tile)))             # (4, n_tile*H*W)


def _full_spec(a):
    nd = a.ndim
    return pl.BlockSpec(a.shape, lambda n: (0,) * nd)


# ---------------------------------------------------------------------------
# Wrapper.
# ---------------------------------------------------------------------------
@functools.partial(jax.jit, static_argnames=("force_per_image",))
def inverted_residual_pallas(x_nchw, folded, force_per_image=False):
    """x_nchw: (N, Cin, H, W) float32 or bfloat16 (PyTorch layout).
    folded: output of fold_params(). Returns (N, Cout, H, W) bfloat16."""
    N, Cin, H, W = x_nchw.shape
    Chid = folded["w_ex"].shape[0]
    Cout = folded["w_pw"].shape[0]
    HW = H * W
    assert Cin == Cout, "residual path requires in_dim == out_dim"
    assert HW % 128 == 0, "H*W must be a multiple of 128 for the lane-dense layout"
    assert Cin % 8 == 0 and Chid % 8 == 0, "channel dims must be multiples of 8"

    kernel = functools.partial(_inv_res_kernel, W=W)
    params_list = [folded["w_ex"], folded["ex_b"], folded["w_dw"], folded["dw_b"],
                   folded["w_pw"], folded["pw_b"]]

    flops = int(N * HW * (2 * Cin * Chid + 18 * Chid + 2 * Chid * Cout))
    compiler_params = pltpu.CompilerParams

    # Small-HW regime: flatten N into the lane axis, single grid step.
    use_flat = (not force_per_image) and (N * HW <= 32768)

    if use_flat:
        L = N * HW
        x_cm = x_nchw.astype(jnp.bfloat16).transpose(1, 0, 2, 3).reshape(Cin, L)
        masks = _edge_masks(H, W, N)                         # tiled per image
        bytes_accessed = int(2 * (Cin + Cout) * L
                             + 2 * (folded["w_ex"].size + folded["w_pw"].size)
                             + 4 * (folded["ex_b"].size + folded["w_dw"].size
                                    + folded["dw_b"].size + folded["pw_b"].size)
                             + 4 * masks.size)
        out_cm = pl.pallas_call(
            kernel,
            out_shape=jax.ShapeDtypeStruct((Cout, L), jnp.bfloat16),
            grid_spec=pltpu.PrefetchScalarGridSpec(
                num_scalar_prefetch=0,
                grid=(1,),
                in_specs=[pl.BlockSpec((Cin, L), lambda n: (0, 0)),
                          *[_full_spec(a) for a in params_list],
                          _full_spec(masks)],
                out_specs=pl.BlockSpec((Cout, L), lambda n: (0, 0)),
            ),
            compiler_params=compiler_params(
                dimension_semantics=("arbitrary",),
                vmem_limit_bytes=64 * 1024 * 1024),
            cost_estimate=pl.CostEstimate(flops=flops, transcendentals=0,
                                          bytes_accessed=bytes_accessed),
        )(x_cm, *params_list, masks)
        return out_cm.reshape(Cout, N, H, W).transpose(1, 0, 2, 3)

    # Production-shape path: one image per grid step (both v7x cores get work).
    x_flat = x_nchw.astype(jnp.bfloat16).reshape(N, Cin, HW)
    masks = _edge_masks(H, W, 1)
    bytes_accessed = int(2 * N * (Cin + Cout) * HW
                         + 2 * (folded["w_ex"].size + folded["w_pw"].size)
                         + 4 * (folded["ex_b"].size + folded["w_dw"].size
                                + folded["dw_b"].size + folded["pw_b"].size)
                         + 4 * masks.size)
    out_flat = pl.pallas_call(
        kernel,
        out_shape=jax.ShapeDtypeStruct((N, Cout, HW), jnp.bfloat16),
        grid_spec=pltpu.PrefetchScalarGridSpec(
            num_scalar_prefetch=0,
            grid=(N,),
            in_specs=[pl.BlockSpec((None, Cin, HW), lambda n: (n, 0, 0)),
                      *[_full_spec(a) for a in params_list],
                      _full_spec(masks)],
            out_specs=pl.BlockSpec((None, Cout, HW), lambda n: (n, 0, 0)),
        ),
        compiler_params=compiler_params(
            dimension_semantics=("parallel",),
            vmem_limit_bytes=64 * 1024 * 1024),
        cost_estimate=pl.CostEstimate(flops=flops, transcendentals=0,
                                      bytes_accessed=bytes_accessed),
    )(x_flat, *params_list, masks)
    return out_flat.reshape(N, Cout, H, W)


# ---------------------------------------------------------------------------
# Parameters (inference-mode BN), exact folding, and pure-JAX references.
# ---------------------------------------------------------------------------
def make_params(key, in_dim, hidden_dim, out_dim):
    ks = jax.random.split(key, 6)
    f = jnp.float32

    def bn_fold(k, c):
        kg, kb, km, kv = jax.random.split(k, 4)
        gamma = 1.0 + 0.1 * jax.random.normal(kg, (c,), f)
        beta = 0.1 * jax.random.normal(kb, (c,), f)
        mean = 0.1 * jax.random.normal(km, (c,), f)
        var = 0.5 + jax.random.uniform(kv, (c,), f)          # strictly positive
        eps = 1e-5
        scale = gamma / jnp.sqrt(var + eps)                  # exact inference fold
        bias = beta - mean * scale
        return scale.reshape(c, 1), bias.reshape(c, 1)

    w_ex = 0.1 * jax.random.normal(ks[0], (hidden_dim, in_dim), f)    # 1x1 Cin->Chid
    ex_scale, ex_bias = bn_fold(ks[1], hidden_dim)
    w_dw = 0.1 * jax.random.normal(ks[2], (hidden_dim, 9), f)         # dw 3x3, k=ki*3+kj
    dw_scale, dw_bias = bn_fold(ks[3], hidden_dim)
    w_pw = 0.1 * jax.random.normal(ks[4], (out_dim, hidden_dim), f)   # 1x1 Chid->Cout
    pw_scale, pw_bias = bn_fold(ks[5], out_dim)
    return dict(w_ex=w_ex, ex_scale=ex_scale, ex_bias=ex_bias,
                w_dw=w_dw, dw_scale=dw_scale, dw_bias=dw_bias,
                w_pw=w_pw, pw_scale=pw_scale, pw_bias=pw_bias)


def fold_params(params):
    """Fold BN scales (and the 0.5 residual factor) into the conv weights.
    Done in f32, before any bf16 cast (exact + no double rounding)."""
    f32 = jnp.float32
    w_ex = (params["w_ex"].astype(f32) * params["ex_scale"].astype(f32)
            ).astype(jnp.bfloat16)
    ex_b = params["ex_bias"].astype(f32)
    w_dw = params["w_dw"].astype(f32) * params["dw_scale"].astype(f32)
    dw_b = params["dw_bias"].astype(f32)
    w_pw = (0.5 * params["w_pw"].astype(f32) * params["pw_scale"].astype(f32)
            ).astype(jnp.bfloat16)
    pw_b = 0.5 * params["pw_bias"].astype(f32)
    return dict(w_ex=w_ex, ex_b=ex_b, w_dw=w_dw, dw_b=dw_b, w_pw=w_pw, pw_b=pw_b)


def inverted_residual_ref(x_nchw, params):
    """Pure f32 NCHW reference with the original (unfolded) module algebra."""
    N, Cin, H, W = x_nchw.shape
    Chid = params["w_ex"].shape[0]
    Cout = params["w_pw"].shape[0]

    h = jnp.einsum("oc,nchw->nohw", params["w_ex"], x_nchw,
                   preferred_element_type=jnp.float32)
    h = jnp.maximum(h * params["ex_scale"].reshape(1, Chid, 1, 1)
                    + params["ex_bias"].reshape(1, Chid, 1, 1), 0.0)
    hp = jnp.pad(h, ((0, 0), (0, 0), (1, 1), (1, 1)))
    acc = jnp.zeros_like(h)
    for k in range(9):
        ki, kj = divmod(k, 3)
        acc = acc + hp[:, :, ki:ki + H, kj:kj + W] \
            * params["w_dw"][:, k].reshape(1, Chid, 1, 1)
    d = jnp.maximum(acc * params["dw_scale"].reshape(1, Chid, 1, 1)
                    + params["dw_bias"].reshape(1, Chid, 1, 1), 0.0)
    p = jnp.einsum("oc,nchw->nohw", params["w_pw"], d,
                   preferred_element_type=jnp.float32)
    p = p * params["pw_scale"].reshape(1, Cout, 1, 1) \
        + params["pw_bias"].reshape(1, Cout, 1, 1)
    return p * 0.5 + x_nchw * 0.5


def inverted_residual_ref_folded(x_nchw, folded):
    """Reference mimicking the kernel's numerics (folded bf16 weights,
    bf16 activation I/O, f32 accumulation)."""
    N, Cin, H, W = x_nchw.shape
    Chid = folded["w_ex"].shape[0]
    Cout = folded["w_pw"].shape[0]
    xb = x_nchw.astype(jnp.bfloat16)

    h = jnp.einsum("oc,nchw->nohw", folded["w_ex"], xb,
                   preferred_element_type=jnp.float32)
    h = jnp.maximum(h + folded["ex_b"].reshape(1, Chid, 1, 1), 0.0)
    hp = jnp.pad(h, ((0, 0), (0, 0), (1, 1), (1, 1)))
    acc = jnp.zeros_like(h)
    for k in range(9):
        ki, kj = divmod(k, 3)
        acc = acc + hp[:, :, ki:ki + H, kj:kj + W] \
            * folded["w_dw"][:, k].reshape(1, Chid, 1, 1)
    d = jnp.maximum(acc + folded["dw_b"].reshape(1, Chid, 1, 1), 0.0)
    p = jnp.einsum("oc,nchw->nohw", folded["w_pw"], d.astype(jnp.bfloat16),
                   preferred_element_type=jnp.float32)
    p = p + folded["pw_b"].reshape(1, Cout, 1, 1) + 0.5 * xb.astype(jnp.float32)
    return p.astype(jnp.bfloat16)


if __name__ == "__main__":
    # Small shapes consistent with the module: stride=1, in_dim==out_dim
    # (residual active), in_dim != hidden_dim (expand branch active).
    N, H, W = 2, 16, 16
    in_dim, hidden_dim, out_dim = 16, 32, 16

    key = jax.random.PRNGKey(0)
    kx, kp = jax.random.split(key)
    x_nchw = jax.random.normal(kx, (N, in_dim, H, W), jnp.float32)   # PyTorch layout
    params = make_params(kp, in_dim, hidden_dim, out_dim)
    folded = fold_params(params)

    # Flattened (small-HW) path.
    out = inverted_residual_pallas(x_nchw, folded)
    out = jax.block_until_ready(out)
    assert out.shape == (N, out_dim, H, W)
    out_f32 = out.astype(jnp.float32)

    # Tight check vs. a reference applying the same folds / bf16 rounding
    # (validates conv structure, separable rolls, masks, residual fold).
    ref_tight = inverted_residual_ref_folded(x_nchw, folded).astype(jnp.float32)
    err = float(jnp.max(jnp.abs(out_f32 - ref_tight)))
    assert jnp.allclose(out_f32, ref_tight, atol=1e-2, rtol=1e-2), err

    # Loose check vs. the unfolded full-f32 module algebra (drift only from
    # bf16 activation/weight quantization).
    ref_f32 = inverted_residual_ref(x_nchw, params)
    err32 = float(jnp.max(jnp.abs(out_f32 - ref_f32)))
    assert jnp.allclose(out_f32, ref_f32, atol=1e-1, rtol=1e-1), err32

    # Per-image grid path (production-shape fallback) must agree with the
    # flattened path.
    out_pi = inverted_residual_pallas(x_nchw, folded, force_per_image=True)
    out_pi = jax.block_until_ready(out_pi).astype(jnp.float32)
    errp = float(jnp.max(jnp.abs(out_f32 - out_pi)))
    assert jnp.allclose(out_f32, out_pi, atol=1e-2, rtol=1e-2), errp

    print("KERNEL_OK")
</pallas_src>

<mosaic_0001>
module attributes {stable_mosaic.version = 11 : i64} {
  func.func @_inv_res_kernel(%arg0: i32, %arg1: memref<16x512xbf16, #tpu.memory_space<vmem>>, %arg2: memref<32x16xbf16, #tpu.memory_space<vmem>>, %arg3: memref<32x1xf32, #tpu.memory_space<vmem>>, %arg4: memref<32x9xf32, #tpu.memory_space<vmem>>, %arg5: memref<32x1xf32, #tpu.memory_space<vmem>>, %arg6: memref<16x32xbf16, #tpu.memory_space<vmem>>, %arg7: memref<16x1xf32, #tpu.memory_space<vmem>>, %arg8: memref<4x512xf32, #tpu.memory_space<vmem>>, %arg9: memref<16x512xbf16, #tpu.memory_space<vmem>>) attributes {dimension_semantics = [#tpu.dimension_semantics<arbitrary>], iteration_bounds = array<i64: 1>, scalar_prefetch = 0 : i64, scratch_operands = 0 : i64, tpu.core_type = #tpu.core_type<tc>, window_params = [{pipeline_mode = #tpu.pipeline_mode<synchronous>, transform_indices = @transform_0, window_bounds = array<i64: 16, 512>}, {pipeline_mode = #tpu.pipeline_mode<synchronous>, transform_indices = @transform_1, window_bounds = array<i64: 32, 16>}, {pipeline_mode = #tpu.pipeline_mode<synchronous>, transform_indices = @transform_2, window_bounds = array<i64: 32, 1>}, {pipeline_mode = #tpu.pipeline_mode<synchronous>, transform_indices = @transform_3, window_bounds = array<i64: 32, 9>}, {pipeline_mode = #tpu.pipeline_mode<synchronous>, transform_indices = @transform_4, window_bounds = array<i64: 32, 1>}, {pipeline_mode = #tpu.pipeline_mode<synchronous>, transform_indices = @transform_5, window_bounds = array<i64: 16, 32>}, {pipeline_mode = #tpu.pipeline_mode<synchronous>, transform_indices = @transform_6, window_bounds = array<i64: 16, 1>}, {pipeline_mode = #tpu.pipeline_mode<synchronous>, transform_indices = @transform_7, window_bounds = array<i64: 4, 512>}, {pipeline_mode = #tpu.pipeline_mode<synchronous>, transform_indices = @transform_8, window_bounds = array<i64: 16, 512>}]} {
    %c0 = arith.constant 0 : index
    %c0_0 = arith.constant 0 : index
    %0 = vector.load %arg1[%c0, %c0_0] : memref<16x512xbf16, #tpu.memory_space<vmem>>, vector<16x512xbf16>
    %c0_1 = arith.constant 0 : index
    %c0_2 = arith.constant 0 : index
    %1 = vector.load %arg2[%c0_1, %c0_2] : memref<32x16xbf16, #tpu.memory_space<vmem>>, vector<32x16xbf16>
    %cst = arith.constant dense<0.000000e+00> : vector<32x512xf32>
    %2 = tpu.matmul %1, %0, %cst {dimension_numbers = #tpu.dot_dimension_numbers<[1], [0], [0], [1], [0, 0, 1, 1], [], []>} : vector<32x16xbf16>, vector<16x512xbf16>, vector<32x512xf32> -> vector<32x512xf32>
    %c0_3 = arith.constant 0 : index
    %c0_4 = arith.constant 0 : index
    %3 = vector.load %arg3[%c0_3, %c0_4] : memref<32x1xf32, #tpu.memory_space<vmem>>, vector<32x1xf32>
    %4 = vector.broadcast %3 : vector<32x1xf32> to vector<32x512xf32>
    %5 = arith.addf %2, %4 : vector<32x512xf32>
    %cst_5 = arith.constant 0.000000e+00 : f32
    %6 = vector.broadcast %cst_5 : f32 to vector<32x512xf32>
    %7 = arith.maximumf %5, %6 : vector<32x512xf32>
    %c0_6 = arith.constant 0 : index
    %c0_7 = arith.constant 0 : index
    %8 = vector.load %arg8[%c0_6, %c0_7] : memref<4x512xf32, #tpu.memory_space<vmem>>, vector<4x512xf32>
    %9 = vector.extract_strided_slice %8 {offsets = [0, 0], sizes = [1, 512], strides = [1, 1]} : vector<4x512xf32> to vector<1x512xf32>
    %10 = vector.extract_strided_slice %8 {offsets = [1, 0], sizes = [1, 512], strides = [1, 1]} : vector<4x512xf32> to vector<1x512xf32>
    %11 = vector.extract_strided_slice %8 {offsets = [2, 0], sizes = [1, 512], strides = [1, 1]} : vector<4x512xf32> to vector<1x512xf32>
    %12 = vector.extract_strided_slice %8 {offsets = [3, 0], sizes = [1, 512], strides = [1, 1]} : vector<4x512xf32> to vector<1x512xf32>
    %c0_8 = arith.constant 0 : index
    %c0_9 = arith.constant 0 : index
    %13 = vector.load %arg4[%c0_8, %c0_9] : memref<32x9xf32, #tpu.memory_space<vmem>>, vector<32x9xf32>
    %c1_i32 = arith.constant 1 : i32
    %14 = tpu.dynamic_rotate %7 by %c1_i32 dim 1 : vector<32x512xf32>, i32 -> vector<32x512xf32>
    %15 = vector.broadcast %11 : vector<1x512xf32> to vector<32x512xf32>
    %16 = arith.mulf %14, %15 : vector<32x512xf32>
    %c511_i32 = arith.constant 511 : i32
    %17 = tpu.dynamic_rotate %7 by %c511_i32 dim 1 : vector<32x512xf32>, i32 -> vector<32x512xf32>
    %18 = vector.broadcast %12 : vector<1x512xf32> to vector<32x512xf32>
    %19 = arith.mulf %17, %18 : vector<32x512xf32>
    %20 = vector.extract_strided_slice %13 {offsets = [0, 0], sizes = [32, 1], strides = [1, 1]} : vector<32x9xf32> to vector<32x1xf32>
    %21 = vector.broadcast %20 : vector<32x1xf32> to vector<32x512xf32>
    %22 = arith.mulf %16, %21 : vector<32x512xf32>
    %23 = vector.extract_strided_slice %13 {offsets = [0, 1], sizes = [32, 1], strides = [1, 1]} : vector<32x9xf32> to vector<32x1xf32>
    %24 = vector.broadcast %23 : vector<32x1xf32> to vector<32x512xf32>
    %25 = arith.mulf %7, %24 : vector<32x512xf32>
    %26 = arith.addf %22, %25 : vector<32x512xf32>
    %27 = vector.extract_strided_slice %13 {offsets = [0, 2], sizes = [32, 1], strides = [1, 1]} : vector<32x9xf32> to vector<32x1xf32>
    %28 = vector.broadcast %27 : vector<32x1xf32> to vector<32x512xf32>
    %29 = arith.mulf %19, %28 : vector<32x512xf32>
    %30 = arith.addf %26, %29 : vector<32x512xf32>
    %31 = vector.extract_strided_slice %13 {offsets = [0, 3], sizes = [32, 1], strides = [1, 1]} : vector<32x9xf32> to vector<32x1xf32>
    %32 = vector.broadcast %31 : vector<32x1xf32> to vector<32x512xf32>
    %33 = arith.mulf %16, %32 : vector<32x512xf32>
    %34 = vector.extract_strided_slice %13 {offsets = [0, 4], sizes = [32, 1], strides = [1, 1]} : vector<32x9xf32> to vector<32x1xf32>
    %35 = vector.broadcast %34 : vector<32x1xf32> to vector<32x512xf32>
    %36 = arith.mulf %7, %35 : vector<32x512xf32>
    %37 = arith.addf %33, %36 : vector<32x512xf32>
    %38 = vector.extract_strided_slice %13 {offsets = [0, 5], sizes = [32, 1], strides = [1, 1]} : vector<32x9xf32> to vector<32x1xf32>
    %39 = vector.broadcast %38 : vector<32x1xf32> to vector<32x512xf32>
    %40 = arith.mulf %19, %39 : vector<32x512xf32>
    %41 = arith.addf %37, %40 : vector<32x512xf32>
    %42 = vector.extract_strided_slice %13 {offsets = [0, 6], sizes = [32, 1], strides = [1, 1]} : vector<32x9xf32> to vector<32x1xf32>
    %43 = vector.broadcast %42 : vector<32x1xf32> to vector<32x512xf32>
    %44 = arith.mulf %16, %43 : vector<32x512xf32>
    %45 = vector.extract_strided_slice %13 {offsets = [0, 7], sizes = [32, 1], strides = [1, 1]} : vector<32x9xf32> to vector<32x1xf32>
    %46 = vector.broadcast %45 : vector<32x1xf32> to vector<32x512xf32>
    %47 = arith.mulf %7, %46 : vector<32x512xf32>
    %48 = arith.addf %44, %47 : vector<32x512xf32>
    %49 = vector.extract_strided_slice %13 {offsets = [0, 8], sizes = [32, 1], strides = [1, 1]} : vector<32x9xf32> to vector<32x1xf32>
    %50 = vector.broadcast %49 : vector<32x1xf32> to vector<32x512xf32>
    %51 = arith.mulf %19, %50 : vector<32x512xf32>
    %52 = arith.addf %48, %51 : vector<32x512xf32>
    %c16_i32 = arith.constant 16 : i32
    %53 = tpu.dynamic_rotate %30 by %c16_i32 dim 1 : vector<32x512xf32>, i32 -> vector<32x512xf32>
    %54 = vector.broadcast %9 : vector<1x512xf32> to vector<32x512xf32>
    %55 = arith.mulf %53, %54 : vector<32x512xf32>
    %56 = arith.addf %55, %41 : vector<32x512xf32>
    %c496_i32 = arith.constant 496 : i32
    %57 = tpu.dynamic_rotate %52 by %c496_i32 dim 1 : vector<32x512xf32>, i32 -> vector<32x512xf32>
    %58 = vector.broadcast %10 : vector<1x512xf32> to vector<32x512xf32>
    %59 = arith.mulf %57, %58 : vector<32x512xf32>
    %60 = arith.addf %56, %59 : vector<32x512xf32>
    %c0_10 = arith.constant 0 : index
    %c0_11 = arith.constant 0 : index
    %61 = vector.load %arg5[%c0_10, %c0_11] : memref<32x1xf32, #tpu.memory_space<vmem>>, vector<32x1xf32>
    %62 = vector.broadcast %61 : vector<32x1xf32> to vector<32x512xf32>
    %63 = arith.addf %60, %62 : vector<32x512xf32>
    %cst_12 = arith.constant 0.000000e+00 : f32
    %64 = vector.broadcast %cst_12 : f32 to vector<32x512xf32>
    %65 = arith.maximumf %63, %64 : vector<32x512xf32>
    %c0_13 = arith.constant 0 : index
    %c0_14 = arith.constant 0 : index
    %66 = vector.load %arg6[%c0_13, %c0_14] : memref<16x32xbf16, #tpu.memory_space<vmem>>, vector<16x32xbf16>
    %67 = arith.truncf %65 : vector<32x512xf32> to vector<32x512xbf16>
    %cst_15 = arith.constant dense<0.000000e+00> : vector<16x512xf32>
    %68 = tpu.matmul %66, %67, %cst_15 {dimension_numbers = #tpu.dot_dimension_numbers<[1], [0], [0], [1], [0, 0, 1, 1], [], []>} : vector<16x32xbf16>, vector<32x512xbf16>, vector<16x512xf32> -> vector<16x512xf32>
    %c0_16 = arith.constant 0 : index
    %c0_17 = arith.constant 0 : index
    %69 = vector.load %arg7[%c0_16, %c0_17] : memref<16x1xf32, #tpu.memory_space<vmem>>, vector<16x1xf32>
    %70 = vector.broadcast %69 : vector<16x1xf32> to vector<16x512xf32>
    %71 = arith.addf %68, %70 : vector<16x512xf32>
    %72 = arith.extf %0 : vector<16x512xbf16> to vector<16x512xf32>
    %cst_18 = arith.constant 5.000000e-01 : f32
    %73 = vector.broadcast %cst_18 : f32 to vector<16x512xf32>
    %74 = arith.mulf %73, %72 : vector<16x512xf32>
    %75 = arith.addf %71, %74 : vector<16x512xf32>
    %76 = arith.truncf %75 : vector<16x512xf32> to vector<16x512xbf16>
    %c0_19 = arith.constant 0 : index
    %c0_20 = arith.constant 0 : index
    %77 = vector.load %arg9[%c0_19, %c0_20] : memref<16x512xbf16, #tpu.memory_space<vmem>>, vector<16x512xbf16>
    tpu.vector_store %arg9[%c0_19, %c0_20], %76 {strides = array<i32>} : memref<16x512xbf16, #tpu.memory_space<vmem>>, vector<16x512xbf16>,
    return
  }
  func.func @transform_0(%arg0: i32) -> (i32, i32) {
    %c0_i32 = arith.constant 0 : i32
    %c0_i32_0 = arith.constant 0 : i32
    %c0_i32_1 = arith.constant 0 : i32
    return %c0_i32, %c0_i32_0 : i32, i32
  }
  func.func @transform_1(%arg0: i32) -> (i32, i32) {
    %c0_i32 = arith.constant 0 : i32
    %c0_i32_0 = arith.constant 0 : i32
    %c0_i32_1 = arith.constant 0 : i32
    return %c0_i32, %c0_i32_0 : i32, i32
  }
  func.func @transform_2(%arg0: i32) -> (i32, i32) {
    %c0_i32 = arith.constant 0 : i32
    %c0_i32_0 = arith.constant 0 : i32
    %c0_i32_1 = arith.constant 0 : i32
    return %c0_i32, %c0_i32_0 : i32, i32
  }
  func.func @transform_3(%arg0: i32) -> (i32, i32) {
    %c0_i32 = arith.constant 0 : i32
    %c0_i32_0 = arith.constant 0 : i32
    %c0_i32_1 = arith.constant 0 : i32
    return %c0_i32, %c0_i32_0 : i32, i32
  }
  func.func @transform_4(%arg0: i32) -> (i32, i32) {
    %c0_i32 = arith.constant 0 : i32
    %c0_i32_0 = arith.constant 0 : i32
    %c0_i32_1 = arith.constant 0 : i32
    return %c0_i32, %c0_i32_0 : i32, i32
  }
  func.func @transform_5(%arg0: i32) -> (i32, i32) {
    %c0_i32 = arith.constant 0 : i32
    %c0_i32_0 = arith.constant 0 : i32
    %c0_i32_1 = arith.constant 0 : i32
    return %c0_i32, %c0_i32_0 : i32, i32
  }
  func.func @transform_6(%arg0: i32) -> (i32, i32) {
    %c0_i32 = arith.constant 0 : i32
    %c0_i32_0 = arith.constant 0 : i32
    %c0_i32_1 = arith.constant 0 : i32
    return %c0_i32, %c0_i32_0 : i32, i32
  }
  func.func @transform_7(%arg0: i32) -> (i32, i32) {
    %c0_i32 = arith.constant 0 : i32
    %c0_i32_0 = arith.constant 0 : i32
    %c0_i32_1 = arith.constant 0 : i32
    return %c0_i32, %c0_i32_0 : i32, i32
  }
  func.func @transform_8(%arg0: i32) -> (i32, i32) {
    %c0_i32 = arith.constant 0 : i32
    %c0_i32_0 = arith.constant 0 : i32
    %c0_i32_1 = arith.constant 0 : i32
    return %c0_i32, %c0_i32_0 : i32, i32
  }
}

</mosaic_0001>

<llo_original>
// kernel: inverted_residual_pallas.1
$region0: #{inverted_residual_pallas.1}
  #allocation0 [shape = 'u32[]', space=smem, size = 0x4, offset = 0x4, fixed_abs, tag = 'smem constant byte address 0x4 - core index']
  #allocation1 [shape = 'u32[144,128]{1,0:T(1,128)}', space=vmem, size = 0x12000, scoped, tag = 'internal scratch']
  %s0 = inlined_call_operand.hbm [shape: bf16[16,512], index: 0, kind: input, shape index: {}]
  %s1 = inlined_call_operand.hbm [shape: bf16[32,16], index: 1, kind: input, shape index: {}]
  %s2 = inlined_call_operand.hbm [shape: f32[32,1], index: 2, kind: input, shape index: {}]
  %s3 = inlined_call_operand.hbm [shape: f32[32,9], index: 3, kind: input, shape index: {}]
  %s4 = inlined_call_operand.hbm [shape: f32[32,1], index: 4, kind: input, shape index: {}]
  %s5 = inlined_call_operand.hbm [shape: bf16[16,32], index: 5, kind: input, shape index: {}]
  %s6 = inlined_call_operand.hbm [shape: f32[16,1], index: 6, kind: input, shape index: {}]
  %s7 = inlined_call_operand.hbm [shape: f32[4,512], index: 7, kind: input, shape index: {}]
  %s8 = inlined_call_operand.hbm [shape: bf16[16,512], index: 8, kind: output, shape index: {}]
  %s9 = sld [smem:[#allocation0]]
  $region74: #{inverted_residual_pallas.1} parent=0
    _
  %s11 = ssub.s32 1, %s9
  %s12 = scalar_select 0, %s11, %s9
  $region1: #{inverted_residual_pallas.1} parent=0
    #allocation2 [shape = 'u8[16384]{0}', space=vmem, size = 0x4000, scoped, tag = 'input window, operand 0, single buffered']
    #allocation3 [shape = 's32[1]{0}', space=sflag, size = 0x4, scoped, tag = 'scoped memory for inverted_residual_pallas.1']
    #allocation4 [shape = 's32[1]{0}', space=sflag, size = 0x4, scoped, tag = 'scoped memory for inverted_residual_pallas.1']
    #allocation5 [shape = 'u8[8192]{0}', space=vmem, size = 0x2000, scoped, tag = 'input window, operand 1, single buffered']
    #allocation6 [shape = 's32[1]{0}', space=sflag, size = 0x4, scoped, tag = 'scoped memory for inverted_residual_pallas.1']
    #allocation7 [shape = 'u8[16384]{0}', space=vmem, size = 0x4000, scoped, tag = 'input window, operand 2, single buffered']
    #allocation8 [shape = 'u8[16384]{0}', space=vmem, size = 0x4000, scoped, tag = 'input window, operand 3, single buffered']
    #allocation9 [shape = 's32[1]{0}', space=sflag, size = 0x4, scoped, tag = 'scoped memory for inverted_residual_pallas.1']
    #allocation10 [shape = 'u8[16384]{0}', space=vmem, size = 0x4000, scoped, tag = 'input window, operand 4, single buffered']
    #allocation11 [shape = 'u8[4096]{0}', space=vmem, size = 0x1000, scoped, tag = 'input window, operand 5, single buffered']
    #allocation12 [shape = 's32[1]{0}', space=sflag, size = 0x4, scoped, tag = 'scoped memory for inverted_residual_pallas.1']
    #allocation13 [shape = 'u8[8192]{0}', space=vmem, size = 0x2000, scoped, tag = 'input window, operand 6, single buffered']
    #allocation14 [shape = 'u8[8192]{0}', space=vmem, size = 0x2000, scoped, tag = 'input window, operand 7, single buffered']
    #allocation15 [shape = 's32[1]{0}', space=sflag, size = 0x4, scoped, tag = 'scoped memory for inverted_residual_pallas.1']
    #allocation16 [shape = 'u8[16384]{0}', space=vmem, size = 0x4000, scoped, tag = 'output window, operand 0, single buffered']
    %13 = vsyncpa [#allocation3], 0
    %14 = vsyncpa [#allocation6], 0
    %15 = vsyncpa [#allocation9], 0
    %16 = vsyncpa [#allocation12], 0
    %17 = vsyncpa [#allocation15], 0
    %18 = vsyncpa [#allocation4], 0
    // Predicated region
    $region2: #{inverted_residual_pallas.1} parent=1 // pred_check
      _
    $region3: #{inverted_residual_pallas.1} parent=1 // pred_check_branch
      %20 = sbr.rel (0) target = $region5
    $region4: #{inverted_residual_pallas.1} parent=1 // pred_region
      %s22 = ssub.s32 512, 512
      %23 = vsyncadd [#allocation3], %s22
      %s24 = sshll.u32 [#allocation2], 4
      %s25 = int_to_ptr.vmem [resolvable:$true] %s24
      %30 = dma.hbm_to_vmem [thread:$0]  %s0, 512, %s25, [#allocation3], 256, 256, 16
    $region5: #{inverted_residual_pallas.1} parent=1 // pred_fallthru
      _
    // Predicated region
    $region6: #{inverted_residual_pallas.1} parent=1 // pred_check
      _
    $region7: #{inverted_residual_pallas.1} parent=1 // pred_check_branch
      %32 = sbr.rel (0) target = $region9
    $region8: #{inverted_residual_pallas.1} parent=1 // pred_region
      %s34 = ssub.s32 256, 256
      %35 = vsyncadd [#allocation6], %s34
      %s36 = sshll.u32 [#allocation5], 4
      %s37 = int_to_ptr.vmem [resolvable:$true] %s36
      %42 = dma.hbm_to_vmem [thread:$0]  %s1, 256, %s37, [#allocation6], 64, 64, 4
    $region9: #{inverted_residual_pallas.1} parent=1 // pred_fallthru
      _
    // Predicated region
    $region10: #{inverted_residual_pallas.1} parent=1 // pred_check
      _
    $region11: #{inverted_residual_pallas.1} parent=1 // pred_check_branch
      %44 = sbr.rel (0) target = $region13
    $region12: #{inverted_residual_pallas.1} parent=1 // pred_region
      %s46 = ssub.s32 512, 512
      %47 = vsyncadd [#allocation6], %s46
      %s48 = sshll.u32 [#allocation7], 4
      %s49 = int_to_ptr.vmem [resolvable:$true] %s48
      %54 = dma.hbm_to_vmem [thread:$0]  %s2, 512, %s49, [#allocation6], 128, 128, 8
    $region13: #{inverted_residual_pallas.1} parent=1 // pred_fallthru
      _
    // Predicated region
    $region14: #{inverted_residual_pallas.1} parent=1 // pred_check
      _
    $region15: #{inverted_residual_pallas.1} parent=1 // pred_check_branch
      %56 = sbr.rel (0) target = $region17
    $region16: #{inverted_residual_pallas.1} parent=1 // pred_region
      %s58 = ssub.s32 512, 512
      %59 = vsyncadd [#allocation9], %s58
      %s60 = sshll.u32 [#allocation8], 4
      %s61 = int_to_ptr.vmem [resolvable:$true] %s60
      %66 = dma.hbm_to_vmem [thread:$0]  %s3, 512, %s61, [#allocation9], 128, 128, 8
    $region17: #{inverted_residual_pallas.1} parent=1 // pred_fallthru
      _
    // Predicated region
    $region18: #{inverted_residual_pallas.1} parent=1 // pred_check
      _
    $region19: #{inverted_residual_pallas.1} parent=1 // pred_check_branch
      %68 = sbr.rel (0) target = $region21
    $region20: #{inverted_residual_pallas.1} parent=1 // pred_region
      %s70 = ssub.s32 512, 512
      %71 = vsyncadd [#allocation9], %s70
      %s72 = sshll.u32 [#allocation10], 4
      %s73 = int_to_ptr.vmem [resolvable:$true] %s72
      %78 = dma.hbm_to_vmem [thread:$0]  %s4, 512, %s73, [#allocation9], 128, 128, 8
    $region21: #{inverted_residual_pallas.1} parent=1 // pred_fallthru
      _
    // Predicated region
    $region22: #{inverted_residual_pallas.1} parent=1 // pred_check
      _
    $region23: #{inverted_residual_pallas.1} parent=1 // pred_check_branch
      %80 = sbr.rel (0) target = $region25
    $region24: #{inverted_residual_pallas.1} parent=1 // pred_region
      %s82 = ssub.s32 128, 128
      %83 = vsyncadd [#allocation12], %s82
      %s84 = sshll.u32 [#allocation11], 4
      %s85 = int_to_ptr.vmem [resolvable:$true] %s84
      %90 = dma.hbm_to_vmem [thread:$0]  %s5, 128, %s85, [#allocation12], 64, 64, 4
    $region25: #{inverted_residual_pallas.1} parent=1 // pred_fallthru
      _
    // Predicated region
    $region26: #{inverted_residual_pallas.1} parent=1 // pred_check
      _
    $region27: #{inverted_residual_pallas.1} parent=1 // pred_check_branch
      %92 = sbr.rel (0) target = $region29
    $region28: #{inverted_residual_pallas.1} parent=1 // pred_region
      %s94 = ssub.s32 256, 256
      %95 = vsyncadd [#allocation12], %s94
      %s96 = sshll.u32 [#allocation13], 4
      %s97 = int_to_ptr.vmem [resolvable:$true] %s96
      %102 = dma.hbm_to_vmem [thread:$0]  %s6, 256, %s97, [#allocation12], 128, 128, 8
    $region29: #{inverted_residual_pallas.1} parent=1 // pred_fallthru
      _
    // Predicated region
    $region30: #{inverted_residual_pallas.1} parent=1 // pred_check
      _
    $region31: #{inverted_residual_pallas.1} parent=1 // pred_check_branch
      %104 = sbr.rel (0) target = $region33
    $region32: #{inverted_residual_pallas.1} parent=1 // pred_region
      %s106 = ssub.s32 256, 256
      %107 = vsyncadd [#allocation15], %s106
      %s109 = sshll.u32 [#allocation14], 4
      %s110 = int_to_ptr.vmem [resolvable:$true] %s109
      %112 = dma.hbm_to_vmem [thread:$0]  %s7, 256, %s110, [#allocation15]
    $region33: #{inverted_residual_pallas.1} parent=1 // pred_fallthru
      _
    // Predicated region
    $region34: #{inverted_residual_pallas.1} parent=1 // pred_check
      _
    $region35: #{inverted_residual_pallas.1} parent=1 // pred_check_branch
      %114 = sbr.rel (0) target = $region37
    $region36: #{inverted_residual_pallas.1} parent=1 // pred_region
      %115 = dma.done [#allocation3], 512
    $region37: #{inverted_residual_pallas.1} parent=1 // pred_fallthru
      _
    // Predicated region
    $region38: #{inverted_residual_pallas.1} parent=1 // pred_check
      _
    $region39: #{inverted_residual_pallas.1} parent=1 // pred_check_branch
      %117 = sbr.rel (0) target = $region41
    $region40: #{inverted_residual_pallas.1} parent=1 // pred_region
      %118 = dma.done [#allocation6], 256
    $region41: #{inverted_residual_pallas.1} parent=1 // pred_fallthru
      _
    // Predicated region
    $region42: #{inverted_residual_pallas.1} parent=1 // pred_check
      _
    $region43: #{inverted_residual_pallas.1} parent=1 // pred_check_branch
      %120 = sbr.rel (0) target = $region45
    $region44: #{inverted_residual_pallas.1} parent=1 // pred_region
      %121 = dma.done [#allocation6], 512
    $region45: #{inverted_residual_pallas.1} parent=1 // pred_fallthru
      _
    // Predicated region
    $region46: #{inverted_residual_pallas.1} parent=1 // pred_check
      _
    $region47: #{inverted_residual_pallas.1} parent=1 // pred_check_branch
      %123 = sbr.rel (0) target = $region49
    $region48: #{inverted_residual_pallas.1} parent=1 // pred_region
      %124 = dma.done [#allocation9], 512
    $region49: #{inverted_residual_pallas.1} parent=1 // pred_fallthru
      _
    // Predicated region
    $region50: #{inverted_residual_pallas.1} parent=1 // pred_check
      _
    $region51: #{inverted_residual_pallas.1} parent=1 // pred_check_branch
      %126 = sbr.rel (0) target = $region53
    $region52: #{inverted_residual_pallas.1} parent=1 // pred_region
      %127 = dma.done [#allocation9], 512
    $region53: #{inverted_residual_pallas.1} parent=1 // pred_fallthru
      _
    // Predicated region
    $region54: #{inverted_residual_pallas.1} parent=1 // pred_check
      _
    $region55: #{inverted_residual_pallas.1} parent=1 // pred_check_branch
      %129 = sbr.rel (0) target = $region57
    $region56: #{inverted_residual_pallas.1} parent=1 // pred_region
      %130 = dma.done [#allocation12], 128
    $region57: #{inverted_residual_pallas.1} parent=1 // pred_fallthru
      _
    // Predicated region
    $region58: #{inverted_residual_pallas.1} parent=1 // pred_check
      _
    $region59: #{inverted_residual_pallas.1} parent=1 // pred_check_branch
      %132 = sbr.rel (0) target = $region61
    $region60: #{inverted_residual_pallas.1} parent=1 // pred_region
      %133 = dma.done [#allocation12], 256
    $region61: #{inverted_residual_pallas.1} parent=1 // pred_fallthru
      _
    // Predicated region
    $region62: #{inverted_residual_pallas.1} parent=1 // pred_check
      _
    $region63: #{inverted_residual_pallas.1} parent=1 // pred_check_branch
      %135 = sbr.rel (0) target = $region65
    $region64: #{inverted_residual_pallas.1} parent=1 // pred_region
      %136 = dma.done [#allocation15], 256
    $region65: #{inverted_residual_pallas.1} parent=1 // pred_fallthru
      _
    %v138 = vld [vmem:[#allocation2] sm:$0xff]
    %v139 = vld [vmem:[#allocation2 + $0x8] sm:$0xff]
    %v140 = vld [vmem:[#allocation2 + $0x10] sm:$0xff]
    %v141 = vld [vmem:[#allocation2 + $0x18] sm:$0xff]
    %v142 = vld [vmem:[#allocation5] sm:$0xf]
    %v143 = vld [vmem:[#allocation5 + $0x4] sm:$0xf]
    %v144 = vld [vmem:[#allocation5 + $0x8] sm:$0xf]
    %v145 = vld [vmem:[#allocation5 + $0xc] sm:$0xf]
    %v146 = vld [vmem:[#allocation7] sm:$0xff]
    %v147 = vld [vmem:[#allocation7 + $0x8] sm:$0xff]
    %v148 = vld [vmem:[#allocation7 + $0x10] sm:$0xff]
    %v149 = vld [vmem:[#allocation7 + $0x18] sm:$0xff]
    %151 = vset.pattern.permute.xlu0 0
    %152 = vperm.xlu0 %151, %v146
    %v153 = vpop.permute.xlu0 %152
    %156 = vset.pattern.permute.xlu0 0
    %157 = vperm.xlu0 %156, %v147
    %v158 = vpop.permute.xlu0 %157
    %161 = vset.pattern.permute.xlu0 0
    %162 = vperm.xlu0 %161, %v148
    %v163 = vpop.permute.xlu0 %162
    %166 = vset.pattern.permute.xlu0 0
    %167 = vperm.xlu0 %166, %v149
    %v168 = vpop.permute.xlu0 %167
    %v174 = vunpack.c.l.b16 %v142
    %v175 = vunpack.c.l.b16 %v143
    %v176 = vunpack.c.l.b16 %v144
    %v177 = vunpack.c.l.b16 %v145
    %v178 = vpack.c.b16 %v175, %v174
    %v179 = vpack.c.b16 %v177, %v176
    %v184 = vunpack.c.l.b16 %v138
    %v185 = vunpack.c.h.b16 %v138
    %v186 = vunpack.c.l.b16 %v139
    %v187 = vunpack.c.h.b16 %v139
    %v188 = vunpack.c.l.b16 %v140
    %v189 = vunpack.c.h.b16 %v140
    %v190 = vunpack.c.l.b16 %v141
    %v191 = vunpack.c.h.b16 %v141
    %v192 = vpack.c.b16 %v188, %v184
    %v193 = vpack.c.b16 %v189, %v185
    %v194 = vpack.c.b16 %v190, %v186
    %v195 = vpack.c.b16 %v191, %v187
    %vm200 = vcmask 130048
    %v202 = vsel %vm200, %v178, 0
    %v205 = vsel %vm200, %v179, 0
    %207 = vmatprep.subr.bf16.mxu0 %v193
    %208 = vmatpush1.bf16.msra.mxu0 %v192
    %209 = vmatprep.subr.bf16.mxu0 0
    %210 = vmatpush1.bf16.msra.mxu0 0
    %211 = vmatprep.subr.bf16.mxu0 0
    %212 = vmatpush1.bf16.msra.mxu0 0
    %213 = vmatprep.subr.bf16.mxu0 0
    %214 = vmatpush1.bf16.msra.mxu0 0
    %215 = vmatprep.subr.bf16.mxu0 0
    %216 = vmatpush1.bf16.msra.mxu0 0
    %217 = vmatprep.subr.bf16.mxu0 0
    %218 = vmatpush1.bf16.msra.mxu0 0
    %219 = vmatprep.subr.bf16.mxu0 0
    %220 = vmatpush1.bf16.msra.mxu0 0
    %221 = vmatprep.subr.bf16.mxu0 0
    %222 = vmatpush1.bf16.msra.mxu0 0
    %223 = vmatprep.subr.bf16.mxu0 0
    %224 = vmatpush1.bf16.msra.mxu0 0
    %225 = vmatprep.subr.bf16.mxu0 0
    %226 = vmatpush1.bf16.msra.mxu0 0
    %227 = vmatprep.subr.bf16.mxu0 0
    %228 = vmatpush1.bf16.msra.mxu0 0
    %229 = vmatprep.subr.bf16.mxu0 0
    %230 = vmatpush1.bf16.msra.mxu0 0
    %231 = vmatprep.subr.bf16.mxu0 0
    %232 = vmatpush1.bf16.msra.mxu0 0
    %233 = vmatprep.subr.bf16.mxu0 0
    %234 = vmatpush1.bf16.msra.mxu0 0
    %235 = vmatprep.subr.bf16.mxu0 0
    %236 = vmatpush1.bf16.msra.mxu0 0
    %237 = vmatprep.subr.bf16.mxu0 0
    %238 = vmatpush1.bf16.msra.mxu0 0
    %239 = vmatprep.mubr.bf16.mxu0 0
    %240 = vmatmul.mubr.bf16.gmra.mrb[0].mxu0 %v202
    %v241 = vpop.f32.mrb[0].mxu0
    %v242 = vadd.f32 %v153, %v241
    %v243 = vpop.f32.mrb[0].mxu0
    %v244 = vadd.f32 %v153, %v243
    %v245 = vpop.f32.mrb[0].mxu0
    %v246 = vadd.f32 %v158, %v245
    %v247 = vpop.f32.mrb[0].mxu0
    %v248 = vadd.f32 %v158, %v247
    %249 = vmatprep.mubr.bf16.mxu0 0
    %250 = vmatmul.mubr.bf16.gmra.mrb[0].mxu0 %v205
    %v251 = vpop.f32.mrb[0].mxu0
    %v252 = vadd.f32 %v163, %v251
    %v253 = vpop.f32.mrb[0].mxu0
    %v254 = vadd.f32 %v163, %v253
    %v255 = vpop.f32.mrb[0].mxu0
    %v256 = vadd.f32 %v168, %v255
    %v257 = vpop.f32.mrb[0].mxu0
    %v258 = vadd.f32 %v168, %v257
    %259 = vdwg.mxu0
    %260 = vmatprep.subr.bf16.mxu0 %v195
    %261 = vmatpush1.bf16.msra.mxu0 %v194
    %262 = vmatprep.subr.bf16.mxu0 0
    %263 = vmatpush1.bf16.msra.mxu0 0
    %264 = vmatprep.subr.bf16.mxu0 0
    %265 = vmatpush1.bf16.msra.mxu0 0
    %266 = vmatprep.subr.bf16.mxu0 0
    %267 = vmatpush1.bf16.msra.mxu0 0
    %268 = vmatprep.subr.bf16.mxu0 0
    %269 = vmatpush1.bf16.msra.mxu0 0
    %270 = vmatprep.subr.bf16.mxu0 0
    %271 = vmatpush1.bf16.msra.mxu0 0
    %272 = vmatprep.subr.bf16.mxu0 0
    %273 = vmatpush1.bf16.msra.mxu0 0
    %274 = vmatprep.subr.bf16.mxu0 0
    %275 = vmatpush1.bf16.msra.mxu0 0
    %276 = vmatprep.subr.bf16.mxu0 0
    %277 = vmatpush1.bf16.msra.mxu0 0
    %278 = vmatprep.subr.bf16.mxu0 0
    %279 = vmatpush1.bf16.msra.mxu0 0
    %280 = vmatprep.subr.bf16.mxu0 0
    %281 = vmatpush1.bf16.msra.mxu0 0
    %282 = vmatprep.subr.bf16.mxu0 0
    %283 = vmatpush1.bf16.msra.mxu0 0
    %284 = vmatprep.subr.bf16.mxu0 0
    %285 = vmatpush1.bf16.msra.mxu0 0
    %286 = vmatprep.subr.bf16.mxu0 0
    %287 = vmatpush1.bf16.msra.mxu0 0
    %288 = vmatprep.subr.bf16.mxu0 0
    %289 = vmatpush1.bf16.msra.mxu0 0
    %290 = vmatprep.subr.bf16.mxu0 0
    %291 = vmatpush1.bf16.msra.mxu0 0
    %292 = vmatprep.mubr.bf16.mxu0 0
    %293 = vmatmul.mubr.bf16.gmra.mrb[0].mxu0 %v202
    %v294 = vpop.f32.mrb[0].mxu0
    %v295 = vadd.f32 %v153, %v294
    %v296 = vpop.f32.mrb[0].mxu0
    %v297 = vadd.f32 %v153, %v296
    %v298 = vpop.f32.mrb[0].mxu0
    %v299 = vadd.f32 %v158, %v298
    %v300 = vpop.f32.mrb[0].mxu0
    %v301 = vadd.f32 %v158, %v300
    %302 = vmatprep.mubr.bf16.mxu0 0
    %303 = vmatmul.mubr.bf16.gmra.mrb[0].mxu0 %v205
    %v304 = vpop.f32.mrb[0].mxu0
    %v305 = vadd.f32 %v163, %v304
    %v306 = vpop.f32.mrb[0].mxu0
    %v307 = vadd.f32 %v163, %v306
    %v308 = vpop.f32.mrb[0].mxu0
    %v309 = vadd.f32 %v168, %v308
    %v310 = vpop.f32.mrb[0].mxu0
    %v311 = vadd.f32 %v168, %v310
    %312 = vdwg.mxu0
    %v313 = vmax.f32 %v242, 0.0
    %v314 = vmax.f32 %v244, 0.0
    %v315 = vmax.f32 %v295, 0.0
    %v316 = vmax.f32 %v297, 0.0
    %v317 = vmax.f32 %v246, 0.0
    %v318 = vmax.f32 %v248, 0.0
    %v319 = vmax.f32 %v299, 0.0
    %v320 = vmax.f32 %v301, 0.0
    %v321 = vmax.f32 %v252, 0.0
    %v322 = vmax.f32 %v254, 0.0
    %v323 = vmax.f32 %v305, 0.0
    %v324 = vmax.f32 %v307, 0.0
    %v325 = vmax.f32 %v256, 0.0
    %v326 = vmax.f32 %v258, 0.0
    %v327 = vmax.f32 %v309, 0.0
    %v328 = vmax.f32 %v311, 0.0
    %v329 = vld [vmem:[#allocation14] sm:$0xff]
    %v330 = vld [vmem:[#allocation14 + $0x8] sm:$0xff]
    %v331 = vld [vmem:[#allocation8] sm:$0xff]
    %v332 = vld [vmem:[#allocation8 + $0x8] sm:$0xff]
    %v333 = vld [vmem:[#allocation8 + $0x10] sm:$0xff]
    %v334 = vld [vmem:[#allocation8 + $0x18] sm:$0xff]
    %335 = vrot.lane.b32.xlu0 %v313, 1
    %v336 = vpop.permute.xlu0 %335
    %337 = vrot.lane.b32.xlu0 %v317, 1
    %v338 = vpop.permute.xlu0 %337
    %339 = vrot.lane.b32.xlu0 %v321, 1
    %v340 = vpop.permute.xlu0 %339
    %341 = vrot.lane.b32.xlu0 %v325, 1
    %v342 = vpop.permute.xlu0 %341
    %343 = vrot.lane.b32.xlu0 %v314, 1
    %v344 = vpop.permute.xlu0 %343
    %345 = vrot.lane.b32.xlu0 %v318, 1
    %v346 = vpop.permute.xlu0 %345
    %347 = vrot.lane.b32.xlu0 %v322, 1
    %v348 = vpop.permute.xlu0 %347
    %349 = vrot.lane.b32.xlu0 %v326, 1
    %v350 = vpop.permute.xlu0 %349
    %351 = vrot.lane.b32.xlu0 %v315, 1
    %v352 = vpop.permute.xlu0 %351
    %353 = vrot.lane.b32.xlu0 %v319, 1
    %v354 = vpop.permute.xlu0 %353
    %355 = vrot.lane.b32.xlu0 %v323, 1
    %v356 = vpop.permute.xlu0 %355
    %357 = vrot.lane.b32.xlu0 %v327, 1
    %v358 = vpop.permute.xlu0 %357
    %359 = vrot.lane.b32.xlu0 %v316, 1
    %v360 = vpop.permute.xlu0 %359
    %361 = vrot.lane.b32.xlu0 %v320, 1
    %v362 = vpop.permute.xlu0 %361
    %363 = vrot.lane.b32.xlu0 %v324, 1
    %v364 = vpop.permute.xlu0 %363
    %365 = vrot.lane.b32.xlu0 %v328, 1
    %v366 = vpop.permute.xlu0 %365
    %v367 = vlaneseq
    %v368 = vand.u32 %v367, 127
    %vm369 = vcmp.lt.s32.totalorder %v368, 1
    %v370 = vsel %vm369, %v352, %v360
    %v371 = vsel %vm369, %v354, %v362
    %v372 = vsel %vm369, %v356, %v364
    %v373 = vsel %vm369, %v358, %v366
    %v374 = vsel %vm369, %v344, %v352
    %v375 = vsel %vm369, %v346, %v354
    %v376 = vsel %vm369, %v348, %v356
    %v377 = vsel %vm369, %v350, %v358
    %v378 = vsel %vm369, %v336, %v344
    %v379 = vsel %vm369, %v338, %v346
    %v380 = vsel %vm369, %v340, %v348
    %v381 = vsel %vm369, %v342, %v350
    %v382 = vsel %vm369, %v360, %v336
    %v383 = vsel %vm369, %v362, %v338
    %v384 = vsel %vm369, %v364, %v340
    %v385 = vsel %vm369, %v366, %v342
    %v388 = vlaneseq
    %v389 = vshrl.u32 %v388, 7
    %v390 = vsub.s32 2, %v389
    %v391 = vrot.slane %v329, %v390
    %v392 = vlaneseq
    %v393 = vshrl.u32 %v392, 7
    %v394 = vsub.s32 6, %v393
    %v395 = vrot.slane %v329, %v394
    %v396 = vlaneseq
    %v397 = vshrl.u32 %v396, 7
    %v398 = vsub.s32 2, %v397
    %v399 = vrot.slane %v330, %v398
    %v400 = vlaneseq
    %v401 = vshrl.u32 %v400, 7
    %v402 = vsub.s32 6, %v401
    %v403 = vrot.slane %v330, %v402
    %v408 = vlaneseq
    %v409 = vshrl.u32 %v408, 7
    %v410 = vsub.s32 2, %v409
    %v411 = vrot.slane %v391, %v410
    %v412 = vlaneseq
    %v413 = vshrl.u32 %v412, 7
    %v414 = vsub.s32 2, %v413
    %v415 = vrot.slane %v395, %v414
    %v416 = vlaneseq
    %v417 = vshrl.u32 %v416, 7
    %v418 = vsub.s32 2, %v417
    %v419 = vrot.slane %v399, %v418
    %v420 = vlaneseq
    %v421 = vshrl.u32 %v420, 7
    %v422 = vsub.s32 2, %v421
    %v423 = vrot.slane %v403, %v422
    %v424 = vmul.f32 %v382, %v411
    %v425 = vmul.f32 %v378, %v415
    %v426 = vmul.f32 %v374, %v419
    %v427 = vmul.f32 %v370, %v423
    %v428 = vmul.f32 %v383, %v411
    %v429 = vmul.f32 %v379, %v415
    %v430 = vmul.f32 %v375, %v419
    %v431 = vmul.f32 %v371, %v423
    %v432 = vmul.f32 %v384, %v411
    %v433 = vmul.f32 %v380, %v415
    %v434 = vmul.f32 %v376, %v419
    %v435 = vmul.f32 %v372, %v423
    %v436 = vmul.f32 %v385, %v411
    %v437 = vmul.f32 %v381, %v415
    %v438 = vmul.f32 %v377, %v419
    %v439 = vmul.f32 %v373, %v423
    %440 = vrot.lane.b32.xlu0 %v313, 127
    %v441 = vpop.permute.xlu0 %440
    %442 = vrot.lane.b32.xlu0 %v317, 127
    %v443 = vpop.permute.xlu0 %442
    %444 = vrot.lane.b32.xlu0 %v321, 127
    %v445 = vpop.permute.xlu0 %444
    %446 = vrot.lane.b32.xlu0 %v325, 127
    %v447 = vpop.permute.xlu0 %446
    %448 = vrot.lane.b32.xlu0 %v314, 127
    %v449 = vpop.permute.xlu0 %448
    %450 = vrot.lane.b32.xlu0 %v318, 127
    %v451 = vpop.permute.xlu0 %450
    %452 = vrot.lane.b32.xlu0 %v322, 127
    %v453 = vpop.permute.xlu0 %452
    %454 = vrot.lane.b32.xlu0 %v326, 127
    %v455 = vpop.permute.xlu0 %454
    %456 = vrot.lane.b32.xlu0 %v315, 127
    %v457 = vpop.permute.xlu0 %456
    %458 = vrot.lane.b32.xlu0 %v319, 127
    %v459 = vpop.permute.xlu0 %458
    %460 = vrot.lane.b32.xlu0 %v323, 127
    %v461 = vpop.permute.xlu0 %460
    %462 = vrot.lane.b32.xlu0 %v327, 127
    %v463 = vpop.permute.xlu0 %462
    %464 = vrot.lane.b32.xlu0 %v316, 127
    %v465 = vpop.permute.xlu0 %464
    %466 = vrot.lane.b32.xlu0 %v320, 127
    %v467 = vpop.permute.xlu0 %466
    %468 = vrot.lane.b32.xlu0 %v324, 127
    %v469 = vpop.permute.xlu0 %468
    %470 = vrot.lane.b32.xlu0 %v328, 127
    %v471 = vpop.permute.xlu0 %470
    %vm472 = vcmp.lt.s32.totalorder %v368, 127
    %v473 = vsel %vm472, %v457, %v465
    %v474 = vsel %vm472, %v459, %v467
    %v475 = vsel %vm472, %v461, %v469
    %v476 = vsel %vm472, %v463, %v471
    %v477 = vsel %vm472, %v449, %v457
    %v478 = vsel %vm472, %v451, %v459
    %v479 = vsel %vm472, %v453, %v461
    %v480 = vsel %vm472, %v455, %v463
    %v481 = vsel %vm472, %v441, %v449
    %v482 = vsel %vm472, %v443, %v451
    %v483 = vsel %vm472, %v445, %v453
    %v484 = vsel %vm472, %v447, %v455
    %v485 = vsel %vm472, %v465, %v441
    %v486 = vsel %vm472, %v467, %v443
    %v487 = vsel %vm472, %v469, %v445
    %v488 = vsel %vm472, %v471, %v447
    %v489 = vlaneseq
    %v490 = vshrl.u32 %v489, 7
    %v491 = vsub.s32 3, %v490
    %v492 = vrot.slane %v329, %v491
    %v493 = vlaneseq
    %v494 = vshrl.u32 %v493, 7
    %v495 = vsub.s32 7, %v494
    %v496 = vrot.slane %v329, %v495
    %v497 = vlaneseq
    %v498 = vshrl.u32 %v497, 7
    %v499 = vsub.s32 3, %v498
    %v500 = vrot.slane %v330, %v499
    %v501 = vlaneseq
    %v502 = vshrl.u32 %v501, 7
    %v503 = vsub.s32 7, %v502
    %v504 = vrot.slane %v330, %v503
    %v509 = vlaneseq
    %v510 = vshrl.u32 %v509, 7
    %v511 = vsub.s32 3, %v510
    %v512 = vrot.slane %v492, %v511
    %v513 = vlaneseq
    %v514 = vshrl.u32 %v513, 7
    %v515 = vsub.s32 3, %v514
    %v516 = vrot.slane %v496, %v515
    %v517 = vlaneseq
    %v518 = vshrl.u32 %v517, 7
    %v519 = vsub.s32 3, %v518
    %v520 = vrot.slane %v500, %v519
    %v521 = vlaneseq
    %v522 = vshrl.u32 %v521, 7
    %v523 = vsub.s32 3, %v522
    %v524 = vrot.slane %v504, %v523
    %v525 = vmul.f32 %v481, %v512
    %v526 = vmul.f32 %v477, %v516
    %v527 = vmul.f32 %v473, %v520
    %v528 = vmul.f32 %v485, %v524
    %v529 = vmul.f32 %v482, %v512
    %v530 = vmul.f32 %v478, %v516
    %v531 = vmul.f32 %v474, %v520
    %v532 = vmul.f32 %v486, %v524
    %v533 = vmul.f32 %v483, %v512
    %v534 = vmul.f32 %v479, %v516
    %v535 = vmul.f32 %v475, %v520
    %v536 = vmul.f32 %v487, %v524
    %v537 = vmul.f32 %v484, %v512
    %v538 = vmul.f32 %v480, %v516
    %v539 = vmul.f32 %v476, %v520
    %v540 = vmul.f32 %v488, %v524
    %542 = vset.pattern.permute.xlu0 0
    %543 = vperm.xlu0 %542, %v331
    %v544 = vpop.permute.xlu0 %543
    %547 = vset.pattern.permute.xlu0 0
    %548 = vperm.xlu0 %547, %v332
    %v549 = vpop.permute.xlu0 %548
    %552 = vset.pattern.permute.xlu0 0
    %553 = vperm.xlu0 %552, %v333
    %v554 = vpop.permute.xlu0 %553
    %557 = vset.pattern.permute.xlu0 0
    %558 = vperm.xlu0 %557, %v334
    %v559 = vpop.permute.xlu0 %558
    %v561 = vmul.f32 %v424, %v544
    %v562 = vmul.f32 %v425, %v544
    %v563 = vmul.f32 %v426, %v544
    %v564 = vmul.f32 %v427, %v544
    %v565 = vmul.f32 %v428, %v549
    %v566 = vmul.f32 %v429, %v549
    %v567 = vmul.f32 %v430, %v549
    %v568 = vmul.f32 %v431, %v549
    %v569 = vmul.f32 %v432, %v554
    %v570 = vmul.f32 %v433, %v554
    %v571 = vmul.f32 %v434, %v554
    %v572 = vmul.f32 %v435, %v554
    %v573 = vmul.f32 %v436, %v559
    %v574 = vmul.f32 %v437, %v559
    %v575 = vmul.f32 %v438, %v559
    %v576 = vmul.f32 %v439, %v559
    %577 = vset.pattern.permute.xlu0 1
    %578 = vperm.xlu0 %577, %v331
    %v579 = vpop.permute.xlu0 %578
    %581 = vset.pattern.permute.xlu0 1
    %582 = vperm.xlu0 %581, %v332
    %v583 = vpop.permute.xlu0 %582
    %585 = vset.pattern.permute.xlu0 1
    %586 = vperm.xlu0 %585, %v333
    %v587 = vpop.permute.xlu0 %586
    %589 = vset.pattern.permute.xlu0 1
    %590 = vperm.xlu0 %589, %v334
    %v591 = vpop.permute.xlu0 %590
    %v593 = vmul.f32 %v313, %v579
    %v594 = vmul.f32 %v314, %v579
    %v595 = vmul.f32 %v315, %v579
    %v596 = vmul.f32 %v316, %v579
    %v597 = vmul.f32 %v317, %v583
    %v598 = vmul.f32 %v318, %v583
    %v599 = vmul.f32 %v319, %v583
    %v600 = vmul.f32 %v320, %v583
    %v601 = vmul.f32 %v321, %v587
    %v602 = vmul.f32 %v322, %v587
    %v603 = vmul.f32 %v323, %v587
    %v604 = vmul.f32 %v324, %v587
    %v605 = vmul.f32 %v325, %v591
    %v606 = vmul.f32 %v326, %v591
    %v607 = vmul.f32 %v327, %v591
    %v608 = vmul.f32 %v328, %v591
    %v609 = vadd.f32 %v561, %v593
    %v610 = vadd.f32 %v562, %v594
    %v611 = vadd.f32 %v563, %v595
    %v612 = vadd.f32 %v564, %v596
    %v613 = vadd.f32 %v565, %v597
    %v614 = vadd.f32 %v566, %v598
    %v615 = vadd.f32 %v567, %v599
    %v616 = vadd.f32 %v568, %v600
    %v617 = vadd.f32 %v569, %v601
    %v618 = vadd.f32 %v570, %v602
    %v619 = vadd.f32 %v571, %v603
    %v620 = vadd.f32 %v572, %v604
    %v621 = vadd.f32 %v573, %v605
    %v622 = vadd.f32 %v574, %v606
    %v623 = vadd.f32 %v575, %v607
    %v624 = vadd.f32 %v576, %v608
    %625 = vset.pattern.permute.xlu0 2
    %626 = vperm.xlu0 %625, %v331
    %v627 = vpop.permute.xlu0 %626
    %629 = vset.pattern.permute.xlu0 2
    %630 = vperm.xlu0 %629, %v332
    %v631 = vpop.permute.xlu0 %630
    %633 = vset.pattern.permute.xlu0 2
    %634 = vperm.xlu0 %633, %v333
    %v635 = vpop.permute.xlu0 %634
    %637 = vset.pattern.permute.xlu0 2
    %638 = vperm.xlu0 %637, %v334
    %v639 = vpop.permute.xlu0 %638
    %v641 = vmul.f32 %v525, %v627
    %v642 = vmul.f32 %v526, %v627
    %v643 = vmul.f32 %v527, %v627
    %v644 = vmul.f32 %v528, %v627
    %v645 = vmul.f32 %v529, %v631
    %v646 = vmul.f32 %v530, %v631
    %v647 = vmul.f32 %v531, %v631
    %v648 = vmul.f32 %v532, %v631
    %v649 = vmul.f32 %v533, %v635
    %v650 = vmul.f32 %v534, %v635
    %v651 = vmul.f32 %v535, %v635
    %v652 = vmul.f32 %v536, %v635
    %v653 = vmul.f32 %v537, %v639
    %v654 = vmul.f32 %v538, %v639
    %v655 = vmul.f32 %v539, %v639
    %v656 = vmul.f32 %v540, %v639
    %v657 = vadd.f32 %v609, %v641
    %v658 = vadd.f32 %v610, %v642
    %v659 = vadd.f32 %v611, %v643
    %v660 = vadd.f32 %v612, %v644
    %v661 = vadd.f32 %v613, %v645
    %v662 = vadd.f32 %v614, %v646
    %v663 = vadd.f32 %v615, %v647
    %v664 = vadd.f32 %v616, %v648
    %v665 = vadd.f32 %v617, %v649
    %v666 = vadd.f32 %v618, %v650
    %v667 = vadd.f32 %v619, %v651
    %v668 = vadd.f32 %v620, %v652
    %v669 = vadd.f32 %v621, %v653
    %v670 = vadd.f32 %v622, %v654
    %v671 = vadd.f32 %v623, %v655
    %v672 = vadd.f32 %v624, %v656
    %673 = vset.pattern.permute.xlu0 3
    %674 = vperm.xlu0 %673, %v331
    %v675 = vpop.permute.xlu0 %674
    %677 = vset.pattern.permute.xlu0 3
    %678 = vperm.xlu0 %677, %v332
    %v679 = vpop.permute.xlu0 %678
    %681 = vset.pattern.permute.xlu0 3
    %682 = vperm.xlu0 %681, %v333
    %v683 = vpop.permute.xlu0 %682
    %685 = vset.pattern.permute.xlu0 3
    %686 = vperm.xlu0 %685, %v334
    %v687 = vpop.permute.xlu0 %686
    %v689 = vmul.f32 %v424, %v675
    %v690 = vmul.f32 %v425, %v675
    %v691 = vmul.f32 %v426, %v675
    %v692 = vmul.f32 %v427, %v675
    %v693 = vmul.f32 %v428, %v679
    %v694 = vmul.f32 %v429, %v679
    %v695 = vmul.f32 %v430, %v679
    %v696 = vmul.f32 %v431, %v679
    %v697 = vmul.f32 %v432, %v683
    %v698 = vmul.f32 %v433, %v683
    %v699 = vmul.f32 %v434, %v683
    %v700 = vmul.f32 %v435, %v683
    %v701 = vmul.f32 %v436, %v687
    %v702 = vmul.f32 %v437, %v687
    %v703 = vmul.f32 %v438, %v687
    %v704 = vmul.f32 %v439, %v687
    %705 = vset.pattern.permute.xlu0 4
    %706 = vperm.xlu0 %705, %v331
    %v707 = vpop.permute.xlu0 %706
    %709 = vset.pattern.permute.xlu0 4
    %710 = vperm.xlu0 %709, %v332
    %v711 = vpop.permute.xlu0 %710
    %713 = vset.pattern.permute.xlu0 4
    %714 = vperm.xlu0 %713, %v333
    %v715 = vpop.permute.xlu0 %714
    %717 = vset.pattern.permute.xlu0 4
    %718 = vperm.xlu0 %717, %v334
    %v719 = vpop.permute.xlu0 %718
    %v721 = vmul.f32 %v313, %v707
    %v722 = vmul.f32 %v314, %v707
    %v723 = vmul.f32 %v315, %v707
    %v724 = vmul.f32 %v316, %v707
    %v725 = vmul.f32 %v317, %v711
    %v726 = vmul.f32 %v318, %v711
    %v727 = vmul.f32 %v319, %v711
    %v728 = vmul.f32 %v320, %v711
    %v729 = vmul.f32 %v321, %v715
    %v730 = vmul.f32 %v322, %v715
    %v731 = vmul.f32 %v323, %v715
    %v732 = vmul.f32 %v324, %v715
    %v733 = vmul.f32 %v325, %v719
    %v734 = vmul.f32 %v326, %v719
    %v735 = vmul.f32 %v327, %v719
    %v736 = vmul.f32 %v328, %v719
    %v737 = vadd.f32 %v689, %v721
    %v738 = vadd.f32 %v690, %v722
    %v739 = vadd.f32 %v691, %v723
    %v740 = vadd.f32 %v692, %v724
    %v741 = vadd.f32 %v693, %v725
    %v742 = vadd.f32 %v694, %v726
    %v743 = vadd.f32 %v695, %v727
    %v744 = vadd.f32 %v696, %v728
    %v745 = vadd.f32 %v697, %v729
    %v746 = vadd.f32 %v698, %v730
    %v747 = vadd.f32 %v699, %v731
    %v748 = vadd.f32 %v700, %v732
    %v749 = vadd.f32 %v701, %v733
    %v750 = vadd.f32 %v702, %v734
    %v751 = vadd.f32 %v703, %v735
    %v752 = vadd.f32 %v704, %v736
    %753 = vset.pattern.permute.xlu0 5
    %754 = vperm.xlu0 %753, %v331
    %v755 = vpop.permute.xlu0 %754
    %757 = vset.pattern.permute.xlu0 5
    %758 = vperm.xlu0 %757, %v332
    %v759 = vpop.permute.xlu0 %758
    %761 = vset.pattern.permute.xlu0 5
    %762 = vperm.xlu0 %761, %v333
    %v763 = vpop.permute.xlu0 %762
    %765 = vset.pattern.permute.xlu0 5
    %766 = vperm.xlu0 %765, %v334
    %v767 = vpop.permute.xlu0 %766
    %v769 = vmul.f32 %v525, %v755
    %v770 = vmul.f32 %v526, %v755
    %v771 = vmul.f32 %v527, %v755
    %v772 = vmul.f32 %v528, %v755
    %v773 = vmul.f32 %v529, %v759
    %v774 = vmul.f32 %v530, %v759
    %v775 = vmul.f32 %v531, %v759
    %v776 = vmul.f32 %v532, %v759
    %v777 = vmul.f32 %v533, %v763
    %v778 = vmul.f32 %v534, %v763
    %v779 = vmul.f32 %v535, %v763
    %v780 = vmul.f32 %v536, %v763
    %v781 = vmul.f32 %v537, %v767
    %v782 = vmul.f32 %v538, %v767
    %v783 = vmul.f32 %v539, %v767
    %v784 = vmul.f32 %v540, %v767
    %v785 = vadd.f32 %v737, %v769
    %v786 = vadd.f32 %v738, %v770
    %v787 = vadd.f32 %v739, %v771
    %v788 = vadd.f32 %v740, %v772
    %v789 = vadd.f32 %v741, %v773
    %v790 = vadd.f32 %v742, %v774
    %v791 = vadd.f32 %v743, %v775
    %v792 = vadd.f32 %v744, %v776
    %v793 = vadd.f32 %v745, %v777
    %v794 = vadd.f32 %v746, %v778
    %v795 = vadd.f32 %v747, %v779
    %v796 = vadd.f32 %v748, %v780
    %v797 = vadd.f32 %v749, %v781
    %v798 = vadd.f32 %v750, %v782
    %v799 = vadd.f32 %v751, %v783
    %v800 = vadd.f32 %v752, %v784
    %801 = vset.pattern.permute.xlu0 6
    %802 = vperm.xlu0 %801, %v331
    %v803 = vpop.permute.xlu0 %802
    %805 = vset.pattern.permute.xlu0 6
    %806 = vperm.xlu0 %805, %v332
    %v807 = vpop.permute.xlu0 %806
    %809 = vset.pattern.permute.xlu0 6
    %810 = vperm.xlu0 %809, %v333
    %v811 = vpop.permute.xlu0 %810
    %813 = vset.pattern.permute.xlu0 6
    %814 = vperm.xlu0 %813, %v334
    %v815 = vpop.permute.xlu0 %814
    %v817 = vmul.f32 %v424, %v803
    %v818 = vmul.f32 %v425, %v803
    %v819 = vmul.f32 %v426, %v803
    %v820 = vmul.f32 %v427, %v803
    %v821 = vmul.f32 %v428, %v807
    %v822 = vmul.f32 %v429, %v807
    %v823 = vmul.f32 %v430, %v807
    %v824 = vmul.f32 %v431, %v807
    %v825 = vmul.f32 %v432, %v811
    %v826 = vmul.f32 %v433, %v811
    %v827 = vmul.f32 %v434, %v811
    %v828 = vmul.f32 %v435, %v811
    %v829 = vmul.f32 %v436, %v815
    %v830 = vmul.f32 %v437, %v815
    %v831 = vmul.f32 %v438, %v815
    %v832 = vmul.f32 %v439, %v815
    %833 = vset.pattern.permute.xlu0 7
    %834 = vperm.xlu0 %833, %v331
    %v835 = vpop.permute.xlu0 %834
    %837 = vset.pattern.permute.xlu0 7
    %838 = vperm.xlu0 %837, %v332
    %v839 = vpop.permute.xlu0 %838
    %841 = vset.pattern.permute.xlu0 7
    %842 = vperm.xlu0 %841, %v333
    %v843 = vpop.permute.xlu0 %842
    %845 = vset.pattern.permute.xlu0 7
    %846 = vperm.xlu0 %845, %v334
    %v847 = vpop.permute.xlu0 %846
    %v849 = vmul.f32 %v313, %v835
    %v850 = vmul.f32 %v314, %v835
    %v851 = vmul.f32 %v315, %v835
    %v852 = vmul.f32 %v316, %v835
    %v853 = vmul.f32 %v317, %v839
    %v854 = vmul.f32 %v318, %v839
    %v855 = vmul.f32 %v319, %v839
    %v856 = vmul.f32 %v320, %v839
    %v857 = vmul.f32 %v321, %v843
    %v858 = vmul.f32 %v322, %v843
    %v859 = vmul.f32 %v323, %v843
    %v860 = vmul.f32 %v324, %v843
    %v861 = vmul.f32 %v325, %v847
    %v862 = vmul.f32 %v326, %v847
    %v863 = vmul.f32 %v327, %v847
    %v864 = vmul.f32 %v328, %v847
    %v865 = vadd.f32 %v817, %v849
    %v866 = vadd.f32 %v818, %v850
    %v867 = vadd.f32 %v819, %v851
    %v868 = vadd.f32 %v820, %v852
    %v869 = vadd.f32 %v821, %v853
    %v870 = vadd.f32 %v822, %v854
    %v871 = vadd.f32 %v823, %v855
    %v872 = vadd.f32 %v824, %v856
    %v873 = vadd.f32 %v825, %v857
    %v874 = vadd.f32 %v826, %v858
    %v875 = vadd.f32 %v827, %v859
    %v876 = vadd.f32 %v828, %v860
    %v877 = vadd.f32 %v829, %v861
    %v878 = vadd.f32 %v830, %v862
    %v879 = vadd.f32 %v831, %v863
    %v880 = vadd.f32 %v832, %v864
    %881 = vset.pattern.permute.xlu0 8
    %882 = vperm.xlu0 %881, %v331
    %v883 = vpop.permute.xlu0 %882
    %885 = vset.pattern.permute.xlu0 8
    %886 = vperm.xlu0 %885, %v332
    %v887 = vpop.permute.xlu0 %886
    %889 = vset.pattern.permute.xlu0 8
    %890 = vperm.xlu0 %889, %v333
    %v891 = vpop.permute.xlu0 %890
    %893 = vset.pattern.permute.xlu0 8
    %894 = vperm.xlu0 %893, %v334
    %v895 = vpop.permute.xlu0 %894
    %v897 = vmul.f32 %v525, %v883
    %v898 = vmul.f32 %v526, %v883
    %v899 = vmul.f32 %v527, %v883
    %v900 = vmul.f32 %v528, %v883
    %v901 = vmul.f32 %v529, %v887
    %v902 = vmul.f32 %v530, %v887
    %v903 = vmul.f32 %v531, %v887
    %v904 = vmul.f32 %v532, %v887
    %v905 = vmul.f32 %v533, %v891
    %v906 = vmul.f32 %v534, %v891
    %v907 = vmul.f32 %v535, %v891
    %v908 = vmul.f32 %v536, %v891
    %v909 = vmul.f32 %v537, %v895
    %v910 = vmul.f32 %v538, %v895
    %v911 = vmul.f32 %v539, %v895
    %v912 = vmul.f32 %v540, %v895
    %v913 = vadd.f32 %v865, %v897
    %v914 = vadd.f32 %v866, %v898
    %v915 = vadd.f32 %v867, %v899
    %v916 = vadd.f32 %v868, %v900
    %v917 = vadd.f32 %v869, %v901
    %v918 = vadd.f32 %v870, %v902
    %v919 = vadd.f32 %v871, %v903
    %v920 = vadd.f32 %v872, %v904
    %v921 = vadd.f32 %v873, %v905
    %v922 = vadd.f32 %v874, %v906
    %v923 = vadd.f32 %v875, %v907
    %v924 = vadd.f32 %v876, %v908
    %v925 = vadd.f32 %v877, %v909
    %v926 = vadd.f32 %v878, %v910
    %v927 = vadd.f32 %v879, %v911
    %v928 = vadd.f32 %v880, %v912
    %929 = vrot.lane.b32.xlu0 %v657, 16
    %v930 = vpop.permute.xlu0 %929
    %931 = vrot.lane.b32.xlu0 %v661, 16
    %v932 = vpop.permute.xlu0 %931
    %933 = vrot.lane.b32.xlu0 %v665, 16
    %v934 = vpop.permute.xlu0 %933
    %935 = vrot.lane.b32.xlu0 %v669, 16
    %v936 = vpop.permute.xlu0 %935
    %937 = vrot.lane.b32.xlu0 %v658, 16
    %v938 = vpop.permute.xlu0 %937
    %939 = vrot.lane.b32.xlu0 %v662, 16
    %v940 = vpop.permute.xlu0 %939
    %941 = vrot.lane.b32.xlu0 %v666, 16
    %v942 = vpop.permute.xlu0 %941
    %943 = vrot.lane.b32.xlu0 %v670, 16
    %v944 = vpop.permute.xlu0 %943
    %945 = vrot.lane.b32.xlu0 %v659, 16
    %v946 = vpop.permute.xlu0 %945
    %947 = vrot.lane.b32.xlu0 %v663, 16
    %v948 = vpop.permute.xlu0 %947
    %949 = vrot.lane.b32.xlu0 %v667, 16
    %v950 = vpop.permute.xlu0 %949
    %951 = vrot.lane.b32.xlu0 %v671, 16
    %v952 = vpop.permute.xlu0 %951
    %953 = vrot.lane.b32.xlu0 %v660, 16
    %v954 = vpop.permute.xlu0 %953
    %955 = vrot.lane.b32.xlu0 %v664, 16
    %v956 = vpop.permute.xlu0 %955
    %957 = vrot.lane.b32.xlu0 %v668, 16
    %v958 = vpop.permute.xlu0 %957
    %959 = vrot.lane.b32.xlu0 %v672, 16
    %v960 = vpop.permute.xlu0 %959
    %vm961 = vcmp.lt.s32.totalorder %v368, 16
    %v962 = vsel %vm961, %v946, %v954
    %v963 = vsel %vm961, %v948, %v956
    %v964 = vsel %vm961, %v950, %v958
    %v965 = vsel %vm961, %v952, %v960
    %v966 = vsel %vm961, %v938, %v946
    %v967 = vsel %vm961, %v940, %v948
    %v968 = vsel %vm961, %v942, %v950
    %v969 = vsel %vm961, %v944, %v952
    %v970 = vsel %vm961, %v930, %v938
    %v971 = vsel %vm961, %v932, %v940
    %v972 = vsel %vm961, %v934, %v942
    %v973 = vsel %vm961, %v936, %v944
    %v974 = vsel %vm961, %v954, %v930
    %v975 = vsel %vm961, %v956, %v932
    %v976 = vsel %vm961, %v958, %v934
    %v977 = vsel %vm961, %v960, %v936
    %v978 = vlaneseq
    %v979 = vshrl.u32 %v978, 7
    %v980 = vsub.s32 0, %v979
    %v981 = vrot.slane %v329, %v980
    %v982 = vlaneseq
    %v983 = vshrl.u32 %v982, 7
    %v984 = vsub.s32 4, %v983
    %v985 = vrot.slane %v329, %v984
    %v986 = vlaneseq
    %v987 = vshrl.u32 %v986, 7
    %v988 = vsub.s32 0, %v987
    %v989 = vrot.slane %v330, %v988
    %v990 = vlaneseq
    %v991 = vshrl.u32 %v990, 7
    %v992 = vsub.s32 4, %v991
    %v993 = vrot.slane %v330, %v992
    %v998 = vlaneseq
    %v999 = vshrl.u32 %v998, 7
    %v1000 = vsub.s32 0, %v999
    %v1001 = vrot.slane %v981, %v1000
    %v1002 = vlaneseq
    %v1003 = vshrl.u32 %v1002, 7
    %v1004 = vsub.s32 0, %v1003
    %v1005 = vrot.slane %v985, %v1004
    %v1006 = vlaneseq
    %v1007 = vshrl.u32 %v1006, 7
    %v1008 = vsub.s32 0, %v1007
    %v1009 = vrot.slane %v989, %v1008
    %v1010 = vlaneseq
    %v1011 = vshrl.u32 %v1010, 7
    %v1012 = vsub.s32 0, %v1011
    %v1013 = vrot.slane %v993, %v1012
    %v1014 = vmul.f32 %v974, %v1001
    %v1015 = vmul.f32 %v970, %v1005
    %v1016 = vmul.f32 %v966, %v1009
    %v1017 = vmul.f32 %v962, %v1013
    %v1018 = vmul.f32 %v975, %v1001
    %v1019 = vmul.f32 %v971, %v1005
    %v1020 = vmul.f32 %v967, %v1009
    %v1021 = vmul.f32 %v963, %v1013
    %v1022 = vmul.f32 %v976, %v1001
    %v1023 = vmul.f32 %v972, %v1005
    %v1024 = vmul.f32 %v968, %v1009
    %v1025 = vmul.f32 %v964, %v1013
    %v1026 = vmul.f32 %v977, %v1001
    %v1027 = vmul.f32 %v973, %v1005
    %v1028 = vmul.f32 %v969, %v1009
    %v1029 = vmul.f32 %v965, %v1013
    %v1030 = vadd.f32 %v1014, %v785
    %v1031 = vadd.f32 %v1015, %v786
    %v1032 = vadd.f32 %v1016, %v787
    %v1033 = vadd.f32 %v1017, %v788
    %v1034 = vadd.f32 %v1018, %v789
    %v1035 = vadd.f32 %v1019, %v790
    %v1036 = vadd.f32 %v1020, %v791
    %v1037 = vadd.f32 %v1021, %v792
    %v1038 = vadd.f32 %v1022, %v793
    %v1039 = vadd.f32 %v1023, %v794
    %v1040 = vadd.f32 %v1024, %v795
    %v1041 = vadd.f32 %v1025, %v796
    %v1042 = vadd.f32 %v1026, %v797
    %v1043 = vadd.f32 %v1027, %v798
    %v1044 = vadd.f32 %v1028, %v799
    %v1045 = vadd.f32 %v1029, %v800
    %1046 = vrot.lane.b32.xlu0 %v913, 112
    %v1047 = vpop.permute.xlu0 %1046
    %1048 = vrot.lane.b32.xlu0 %v917, 112
    %v1049 = vpop.permute.xlu0 %1048
    %1050 = vrot.lane.b32.xlu0 %v921, 112
    %v1051 = vpop.permute.xlu0 %1050
    %1052 = vrot.lane.b32.xlu0 %v925, 112
    %v1053 = vpop.permute.xlu0 %1052
    %1054 = vrot.lane.b32.xlu0 %v914, 112
    %v1055 = vpop.permute.xlu0 %1054
    %1056 = vrot.lane.b32.xlu0 %v918, 112
    %v1057 = vpop.permute.xlu0 %1056
    %1058 = vrot.lane.b32.xlu0 %v922, 112
    %v1059 = vpop.permute.xlu0 %1058
    %1060 = vrot.lane.b32.xlu0 %v926, 112
    %v1061 = vpop.permute.xlu0 %1060
    %1062 = vrot.lane.b32.xlu0 %v915, 112
    %v1063 = vpop.permute.xlu0 %1062
    %1064 = vrot.lane.b32.xlu0 %v919, 112
    %v1065 = vpop.permute.xlu0 %1064
    %1066 = vrot.lane.b32.xlu0 %v923, 112
    %v1067 = vpop.permute.xlu0 %1066
    %1068 = vrot.lane.b32.xlu0 %v927, 112
    %v1069 = vpop.permute.xlu0 %1068
    %1070 = vrot.lane.b32.xlu0 %v916, 112
    %v1071 = vpop.permute.xlu0 %1070
    %1072 = vrot.lane.b32.xlu0 %v920, 112
    %v1073 = vpop.permute.xlu0 %1072
    %1074 = vrot.lane.b32.xlu0 %v924, 112
    %v1075 = vpop.permute.xlu0 %1074
    %1076 = vrot.lane.b32.xlu0 %v928, 112
    %v1077 = vpop.permute.xlu0 %1076
    %vm1078 = vcmp.lt.s32.totalorder %v368, 112
    %v1079 = vsel %vm1078, %v1063, %v1071
    %v1080 = vsel %vm1078, %v1065, %v1073
    %v1081 = vsel %vm1078, %v1067, %v1075
    %v1082 = vsel %vm1078, %v1069, %v1077
    %v1083 = vsel %vm1078, %v1055, %v1063
    %v1084 = vsel %vm1078, %v1057, %v1065
    %v1085 = vsel %vm1078, %v1059, %v1067
    %v1086 = vsel %vm1078, %v1061, %v1069
    %v1087 = vsel %vm1078, %v1047, %v1055
    %v1088 = vsel %vm1078, %v1049, %v1057
    %v1089 = vsel %vm1078, %v1051, %v1059
    %v1090 = vsel %vm1078, %v1053, %v1061
    %v1091 = vsel %vm1078, %v1071, %v1047
    %v1092 = vsel %vm1078, %v1073, %v1049
    %v1093 = vsel %vm1078, %v1075, %v1051
    %v1094 = vsel %vm1078, %v1077, %v1053
    %v1095 = vlaneseq
    %v1096 = vshrl.u32 %v1095, 7
    %v1097 = vsub.s32 1, %v1096
    %v1098 = vrot.slane %v329, %v1097
    %v1099 = vlaneseq
    %v1100 = vshrl.u32 %v1099, 7
    %v1101 = vsub.s32 5, %v1100
    %v1102 = vrot.slane %v329, %v1101
    %v1103 = vlaneseq
    %v1104 = vshrl.u32 %v1103, 7
    %v1105 = vsub.s32 1, %v1104
    %v1106 = vrot.slane %v330, %v1105
    %v1107 = vlaneseq
    %v1108 = vshrl.u32 %v1107, 7
    %v1109 = vsub.s32 5, %v1108
    %v1110 = vrot.slane %v330, %v1109
    %v1115 = vlaneseq
    %v1116 = vshrl.u32 %v1115, 7
    %v1117 = vsub.s32 1, %v1116
    %v1118 = vrot.slane %v1098, %v1117
    %v1119 = vlaneseq
    %v1120 = vshrl.u32 %v1119, 7
    %v1121 = vsub.s32 1, %v1120
    %v1122 = vrot.slane %v1102, %v1121
    %v1123 = vlaneseq
    %v1124 = vshrl.u32 %v1123, 7
    %v1125 = vsub.s32 1, %v1124
    %v1126 = vrot.slane %v1106, %v1125
    %v1127 = vlaneseq
    %v1128 = vshrl.u32 %v1127, 7
    %v1129 = vsub.s32 1, %v1128
    %v1130 = vrot.slane %v1110, %v1129
    %v1131 = vmul.f32 %v1087, %v1118
    %v1132 = vmul.f32 %v1083, %v1122
    %v1133 = vmul.f32 %v1079, %v1126
    %v1134 = vmul.f32 %v1091, %v1130
    %v1135 = vmul.f32 %v1088, %v1118
    %v1136 = vmul.f32 %v1084, %v1122
    %v1137 = vmul.f32 %v1080, %v1126
    %v1138 = vmul.f32 %v1092, %v1130
    %v1139 = vmul.f32 %v1089, %v1118
    %v1140 = vmul.f32 %v1085, %v1122
    %v1141 = vmul.f32 %v1081, %v1126
    %v1142 = vmul.f32 %v1093, %v1130
    %v1143 = vmul.f32 %v1090, %v1118
    %v1144 = vmul.f32 %v1086, %v1122
    %v1145 = vmul.f32 %v1082, %v1126
    %v1146 = vmul.f32 %v1094, %v1130
    %v1147 = vadd.f32 %v1030, %v1131
    %v1148 = vadd.f32 %v1031, %v1132
    %v1149 = vadd.f32 %v1032, %v1133
    %v1150 = vadd.f32 %v1033, %v1134
    %v1151 = vadd.f32 %v1034, %v1135
    %v1152 = vadd.f32 %v1035, %v1136
    %v1153 = vadd.f32 %v1036, %v1137
    %v1154 = vadd.f32 %v1037, %v1138
    %v1155 = vadd.f32 %v1038, %v1139
    %v1156 = vadd.f32 %v1039, %v1140
    %v1157 = vadd.f32 %v1040, %v1141
    %v1158 = vadd.f32 %v1041, %v1142
    %v1159 = vadd.f32 %v1042, %v1143
    %v1160 = vadd.f32 %v1043, %v1144
    %v1161 = vadd.f32 %v1044, %v1145
    %v1162 = vadd.f32 %v1045, %v1146
    %v1163 = vld [vmem:[#allocation10] sm:$0xff]
    %v1164 = vld [vmem:[#allocation10 + $0x8] sm:$0xff]
    %v1165 = vld [vmem:[#allocation10 + $0x10] sm:$0xff]
    %v1166 = vld [vmem:[#allocation10 + $0x18] sm:$0xff]
    %1168 = vset.pattern.permute.xlu0 0
    %1169 = vperm.xlu0 %1168, %v1163
    %v1170 = vpop.permute.xlu0 %1169
    %1173 = vset.pattern.permute.xlu0 0
    %1174 = vperm.xlu0 %1173, %v1164
    %v1175 = vpop.permute.xlu0 %1174
    %1178 = vset.pattern.permute.xlu0 0
    %1179 = vperm.xlu0 %1178, %v1165
    %v1180 = vpop.permute.xlu0 %1179
    %1183 = vset.pattern.permute.xlu0 0
    %1184 = vperm.xlu0 %1183, %v1166
    %v1185 = vpop.permute.xlu0 %1184
    %v1187 = vadd.f32 %v1147, %v1170
    %v1188 = vadd.f32 %v1148, %v1170
    %v1189 = vadd.f32 %v1149, %v1170
    %v1190 = vadd.f32 %v1150, %v1170
    %v1191 = vadd.f32 %v1151, %v1175
    %v1192 = vadd.f32 %v1152, %v1175
    %v1193 = vadd.f32 %v1153, %v1175
    %v1194 = vadd.f32 %v1154, %v1175
    %v1195 = vadd.f32 %v1155, %v1180
    %v1196 = vadd.f32 %v1156, %v1180
    %v1197 = vadd.f32 %v1157, %v1180
    %v1198 = vadd.f32 %v1158, %v1180
    %v1199 = vadd.f32 %v1159, %v1185
    %v1200 = vadd.f32 %v1160, %v1185
    %v1201 = vadd.f32 %v1161, %v1185
    %v1202 = vadd.f32 %v1162, %v1185
    %v1203 = vmax.f32 %v1187, 0.0
    %v1204 = vmax.f32 %v1188, 0.0
    %v1205 = vmax.f32 %v1189, 0.0
    %v1206 = vmax.f32 %v1190, 0.0
    %v1207 = vmax.f32 %v1191, 0.0
    %v1208 = vmax.f32 %v1192, 0.0
    %v1209 = vmax.f32 %v1193, 0.0
    %v1210 = vmax.f32 %v1194, 0.0
    %v1211 = vmax.f32 %v1195, 0.0
    %v1212 = vmax.f32 %v1196, 0.0
    %v1213 = vmax.f32 %v1197, 0.0
    %v1214 = vmax.f32 %v1198, 0.0
    %v1215 = vmax.f32 %v1199, 0.0
    %v1216 = vmax.f32 %v1200, 0.0
    %v1217 = vmax.f32 %v1201, 0.0
    %v1218 = vmax.f32 %v1202, 0.0
    %v1219 = vld [vmem:[#allocation11] sm:$0xf]
    %v1220 = vld [vmem:[#allocation11 + $0x4] sm:$0xf]
    %v1221 = vpack.c.bf16 %v1207, %v1203
    %v1222 = vpack.c.bf16 %v1208, %v1204
    %v1223 = vpack.c.bf16 %v1209, %v1205
    %v1224 = vpack.c.bf16 %v1210, %v1206
    %v1225 = vpack.c.bf16 %v1215, %v1211
    %v1226 = vpack.c.bf16 %v1216, %v1212
    %v1227 = vpack.c.bf16 %v1217, %v1213
    %v1228 = vpack.c.bf16 %v1218, %v1214
    %v1229 = vld [vmem:[#allocation13] sm:$0xff]
    %v1230 = vld [vmem:[#allocation13 + $0x8] sm:$0xff]
    %1232 = vset.pattern.permute.xlu0 0
    %1233 = vperm.xlu0 %1232, %v1229
    %v1234 = vpop.permute.xlu0 %1233
    %1237 = vset.pattern.permute.xlu0 0
    %1238 = vperm.xlu0 %1237, %v1230
    %v1239 = vpop.permute.xlu0 %1238
    %v1243 = vunpack.c.l.b16 %v1219
    %v1244 = vunpack.c.l.b16 %v1220
    %v1245 = vpack.c.b16 %v1244, %v1243
    %vm1246 = vcmask 261120
    %v1248 = vsel %vm1246, %v1245, 0
    %1250 = vmatprep.subr.bf16.mxu0 %v1222
    %1251 = vmatpush1.bf16.msra.mxu0 %v1221
    %1252 = vmatprep.subr.bf16.mxu0 %v1226
    %1253 = vmatpush1.bf16.msra.mxu0 %v1225
    %1254 = vmatprep.subr.bf16.mxu0 0
    %1255 = vmatpush1.bf16.msra.mxu0 0
    %1256 = vmatprep.subr.bf16.mxu0 0
    %1257 = vmatpush1.bf16.msra.mxu0 0
    %1258 = vmatprep.subr.bf16.mxu0 0
    %1259 = vmatpush1.bf16.msra.mxu0 0
    %1260 = vmatprep.subr.bf16.mxu0 0
    %1261 = vmatpush1.bf16.msra.mxu0 0
    %1262 = vmatprep.subr.bf16.mxu0 0
    %1263 = vmatpush1.bf16.msra.mxu0 0
    %1264 = vmatprep.subr.bf16.mxu0 0
    %1265 = vmatpush1.bf16.msra.mxu0 0
    %1266 = vmatprep.subr.bf16.mxu0 0
    %1267 = vmatpush1.bf16.msra.mxu0 0
    %1268 = vmatprep.subr.bf16.mxu0 0
    %1269 = vmatpush1.bf16.msra.mxu0 0
    %1270 = vmatprep.subr.bf16.mxu0 0
    %1271 = vmatpush1.bf16.msra.mxu0 0
    %1272 = vmatprep.subr.bf16.mxu0 0
    %1273 = vmatpush1.bf16.msra.mxu0 0
    %1274 = vmatprep.subr.bf16.mxu0 0
    %1275 = vmatpush1.bf16.msra.mxu0 0
    %1276 = vmatprep.subr.bf16.mxu0 0
    %1277 = vmatpush1.bf16.msra.mxu0 0
    %1278 = vmatprep.subr.bf16.mxu0 0
    %1279 = vmatpush1.bf16.msra.mxu0 0
    %1280 = vmatprep.subr.bf16.mxu0 0
    %1281 = vmatpush1.bf16.msra.mxu0 0
    %1282 = vmatprep.mubr.bf16.mxu0 0
    %1283 = vmatmul.mubr.bf16.gmra.mrb[0].mxu0 %v1248
    %v1284 = vpop.f32.mrb[0].mxu0
    %v1285 = vadd.f32 %v1234, %v1284
    %v1286 = vpop.f32.mrb[0].mxu0
    %v1287 = vadd.f32 %v1234, %v1286
    %v1288 = vpop.f32.mrb[0].mxu0
    %v1289 = vadd.f32 %v1239, %v1288
    %v1290 = vpop.f32.mrb[0].mxu0
    %v1291 = vadd.f32 %v1239, %v1290
    %1292 = vdwg.mxu0
    %1293 = vmatprep.subr.bf16.mxu0 %v1224
    %1294 = vmatpush1.bf16.msra.mxu0 %v1223
    %1295 = vmatprep.subr.bf16.mxu0 %v1228
    %1296 = vmatpush1.bf16.msra.mxu0 %v1227
    %1297 = vmatprep.subr.bf16.mxu0 0
    %1298 = vmatpush1.bf16.msra.mxu0 0
    %1299 = vmatprep.subr.bf16.mxu0 0
    %1300 = vmatpush1.bf16.msra.mxu0 0
    %1301 = vmatprep.subr.bf16.mxu0 0
    %1302 = vmatpush1.bf16.msra.mxu0 0
    %1303 = vmatprep.subr.bf16.mxu0 0
    %1304 = vmatpush1.bf16.msra.mxu0 0
    %1305 = vmatprep.subr.bf16.mxu0 0
    %1306 = vmatpush1.bf16.msra.mxu0 0
    %1307 = vmatprep.subr.bf16.mxu0 0
    %1308 = vmatpush1.bf16.msra.mxu0 0
    %1309 = vmatprep.subr.bf16.mxu0 0
    %1310 = vmatpush1.bf16.msra.mxu0 0
    %1311 = vmatprep.subr.bf16.mxu0 0
    %1312 = vmatpush1.bf16.msra.mxu0 0
    %1313 = vmatprep.subr.bf16.mxu0 0
    %1314 = vmatpush1.bf16.msra.mxu0 0
    %1315 = vmatprep.subr.bf16.mxu0 0
    %1316 = vmatpush1.bf16.msra.mxu0 0
    %1317 = vmatprep.subr.bf16.mxu0 0
    %1318 = vmatpush1.bf16.msra.mxu0 0
    %1319 = vmatprep.subr.bf16.mxu0 0
    %1320 = vmatpush1.bf16.msra.mxu0 0
    %1321 = vmatprep.subr.bf16.mxu0 0
    %1322 = vmatpush1.bf16.msra.mxu0 0
    %1323 = vmatprep.subr.bf16.mxu0 0
    %1324 = vmatpush1.bf16.msra.mxu0 0
    %1325 = vmatprep.mubr.bf16.mxu0 0
    %1326 = vmatmul.mubr.bf16.gmra.mrb[0].mxu0 %v1248
    %v1327 = vpop.f32.mrb[0].mxu0
    %v1328 = vadd.f32 %v1234, %v1327
    %v1329 = vpop.f32.mrb[0].mxu0
    %v1330 = vadd.f32 %v1234, %v1329
    %v1331 = vpop.f32.mrb[0].mxu0
    %v1332 = vadd.f32 %v1239, %v1331
    %v1333 = vpop.f32.mrb[0].mxu0
    %v1334 = vadd.f32 %v1239, %v1333
    %1335 = vdwg.mxu0
    %v1336 = vunpack.c.l.bf16 %v138
    %v1337 = vunpack.c.h.bf16 %v138
    %v1338 = vunpack.c.l.bf16 %v139
    %v1339 = vunpack.c.h.bf16 %v139
    %v1340 = vunpack.c.l.bf16 %v140
    %v1341 = vunpack.c.h.bf16 %v140
    %v1342 = vunpack.c.l.bf16 %v141
    %v1343 = vunpack.c.h.bf16 %v141
    %v1344 = vmul.f32 %v1336, 0.5
    %v1345 = vmul.f32 %v1337, 0.5
    %v1346 = vmul.f32 %v1338, 0.5
    %v1347 = vmul.f32 %v1339, 0.5
    %v1348 = vmul.f32 %v1340, 0.5
    %v1349 = vmul.f32 %v1341, 0.5
    %v1350 = vmul.f32 %v1342, 0.5
    %v1351 = vmul.f32 %v1343, 0.5
    %v1352 = vadd.f32 %v1285, %v1344
    %v1353 = vadd.f32 %v1287, %v1345
    %v1354 = vadd.f32 %v1328, %v1346
    %v1355 = vadd.f32 %v1330, %v1347
    %v1356 = vadd.f32 %v1289, %v1348
    %v1357 = vadd.f32 %v1291, %v1349
    %v1358 = vadd.f32 %v1332, %v1350
    %v1359 = vadd.f32 %v1334, %v1351
    %v1360 = vpack.c.bf16 %v1356, %v1352
    %v1361 = vpack.c.bf16 %v1357, %v1353
    %v1362 = vpack.c.bf16 %v1358, %v1354
    %v1363 = vpack.c.bf16 %v1359, %v1355
    %v1368 = vunpack.c.l.b16 %v1360
    %v1369 = vunpack.c.l.b16 %v1361
    %v1370 = vunpack.c.l.b16 %v1362
    %v1371 = vunpack.c.l.b16 %v1363
    %v1372 = vunpack.c.h.b16 %v1360
    %v1373 = vunpack.c.h.b16 %v1361
    %v1374 = vunpack.c.h.b16 %v1362
    %v1375 = vunpack.c.h.b16 %v1363
    %v1376 = vpack.c.b16 %v1369, %v1368
    %v1377 = vpack.c.b16 %v1371, %v1370
    %v1378 = vpack.c.b16 %v1373, %v1372
    %v1379 = vpack.c.b16 %v1375, %v1374
    %1384 = vst [vmem:[#allocation16] sm:$0xff] %v1376
    %1385 = vst [vmem:[#allocation16 + $0x8] sm:$0xff] %v1377
    %1386 = vst [vmem:[#allocation16 + $0x10] sm:$0xff] %v1378
    %1387 = vst [vmem:[#allocation16 + $0x18] sm:$0xff] %v1379
    // Predicated region
    $region66: #{inverted_residual_pallas.1} parent=1 // pred_check
      _
    $region67: #{inverted_residual_pallas.1} parent=1 // pred_check_branch
      %1389 = sbr.rel (0) target = $region69
    $region68: #{inverted_residual_pallas.1} parent=1 // pred_region
      %s1391 = ssub.s32 512, 512
      %1392 = vsyncadd [#allocation4], %s1391
      %s1393 = sshll.u32 [#allocation16], 4
      %s1394 = int_to_ptr.vmem [resolvable:$true] %s1393
      %1399 = dma.vmem_to_hbm [thread:$0]  %s1394, 512, %s8, [#allocation4], 256, 256, 16
    $region69: #{inverted_residual_pallas.1} parent=1 // pred_fallthru
      _
    // Predicated region
    $region70: #{inverted_residual_pallas.1} parent=1 // pred_check
      _
    $region71: #{inverted_residual_pallas.1} parent=1 // pred_check_branch
      %1401 = sbr.rel (0) target = $region73
    $region72: #{inverted_residual_pallas.1} parent=1 // pred_region
      %1402 = dma.done [#allocation4], 512
    $region73: #{inverted_residual_pallas.1} parent=1 // pred_fallthru
      _
    %1403 = vsyncpa [#allocation3], 1
    %1404 = vsyncpa [#allocation6], 1
    %1405 = vsyncpa [#allocation9], 1
    %1406 = vsyncpa [#allocation12], 1
    %1407 = vsyncpa [#allocation15], 1
    %1408 = vsyncpa [#allocation4], 1

</llo_original>
